<compile_context>
chip_gen: v7x
topology: tpu7x:2x2x1
jax: 0.10.0
libtpu: 0.0.40
codegen_flags: <defaults>
</compile_context>

<pallas_src>
import jax
import jax.numpy as jnp
from jax.experimental import pallas as pl
from jax.experimental.pallas import tpu as pltpu

# MLP architecture (PINN-style): input dim 2 (x, t), 3 hidden tanh layers, scalar output.
LAYERS = [2, 32, 32, 32, 1]


def _make_dnn_kernel(n_layers):
    """Kernel over one batch tile.

    Refs (in order): xt [2, tile_n], then (W_l [dout, din], b_l [dout, 1]) per layer,
    then o [d_out, tile_n].  All math in f32; the batch lives on the lane axis.
    """

    def kernel(xt_ref, *refs):
        o_ref = refs[-1]
        h = xt_ref[...]                                        # [2, tile_n] (row0=x, row1=t)
        for l in range(n_layers):
            w = refs[2 * l][...]                               # [dout, din]
            b = refs[2 * l + 1][...]                           # [dout, 1] -> lane broadcast
            z = jnp.dot(w, h, preferred_element_type=jnp.float32) + b
            h = jnp.tanh(z) if l < n_layers - 1 else z
        o_ref[...] = h.astype(o_ref.dtype)

    return kernel


def dnn_forward(x, t, params, *, tile_n=1024):
    """x, t: [N, 1] f32.  params: list of (W [dout, din], b [dout]) in torch layout.

    Returns [N, layers[-1]] f32, matching DNN.forward(x, t).
    """
    N = x.shape[0]
    n_layers = len(params)
    d_out = params[-1][0].shape[0]

    # Don't over-tile tiny batches: shrink tile_n to the padded batch size
    # (kept a multiple of 128 so lanes stay dense).
    tile_n = min(tile_n, max(128, pl.cdiv(N, 128) * 128))

    # Feature-major input slab: [2, N]; row 0 = x, row 1 = t (same order as hstack).
    xt = jnp.concatenate(
        [x.reshape(1, N), t.reshape(1, N)], axis=0).astype(jnp.float32)

    # Pad the batch (lane) axis up to a multiple of tile_n; padded columns are
    # computed and then sliced off (cheap, keeps all stores unmasked/lane-dense).
    n_pad = pl.cdiv(N, tile_n) * tile_n
    if n_pad != N:
        xt = jnp.pad(xt, ((0, 0), (0, n_pad - N)))

    # Flatten (W, b) pairs; constant index_maps keep them VMEM-resident across steps.
    # TODO(synk): the 8 tiny param operands could be packed into one blob to save a
    # few launch-time micro-DMAs; left separate for lowering simplicity.
    flat_params = []
    in_specs = [pl.BlockSpec((2, tile_n), lambda i: (0, i))]   # batch tile of [2, N]
    for (w, b) in params:
        b2 = b.reshape(-1, 1).astype(jnp.float32)              # [dout, 1]
        w = w.astype(jnp.float32)
        flat_params += [w, b2]
        in_specs += [
            pl.BlockSpec(w.shape, lambda i: (0, 0)),
            pl.BlockSpec(b2.shape, lambda i: (0, 0)),
        ]

    out_t = pl.pallas_call(
        _make_dnn_kernel(n_layers),
        out_shape=jax.ShapeDtypeStruct((d_out, n_pad), jnp.float32),
        grid_spec=pltpu.PrefetchScalarGridSpec(
            num_scalar_prefetch=0,
            grid=(n_pad // tile_n,),
            in_specs=in_specs,
            out_specs=pl.BlockSpec((d_out, tile_n), lambda i: (0, i)),
        ),
        compiler_params=pltpu.CompilerParams(
            dimension_semantics=("parallel",)),
    )(xt, *flat_params)

    # Back to batch-major [N, d_out], dropping padded columns (trivial XLA reshape/T).
    return out_t[:, :N].T


def init_params(layers, key):
    """torch.nn.Linear-style init; W stored [out, in], b stored [out]."""
    params = []
    for i in range(len(layers) - 1):
        key, kw, kb = jax.random.split(key, 3)
        fan_in = layers[i]
        bound = 1.0 / jnp.sqrt(fan_in)
        w = jax.random.uniform(kw, (layers[i + 1], layers[i]),
                               minval=-bound, maxval=bound, dtype=jnp.float32)
        b = jax.random.uniform(kb, (layers[i + 1],),
                               minval=-bound, maxval=bound, dtype=jnp.float32)
        params.append((w, b))
    return params


def reference_forward(x, t, params):
    """Pure-JAX reference, batch-major, identical math to the torch module."""
    h = jnp.concatenate([x, t], axis=-1)          # hstack((x, t))
    for (w, b) in params[:-1]:
        h = jnp.tanh(h @ w.T + b)
    w, b = params[-1]
    return h @ w.T + b


if __name__ == "__main__":
    key = jax.random.PRNGKey(0)
    kx, kt, kp = jax.random.split(key, 3)

    # Collocation points; deliberately not a multiple of the tile to exercise the
    # ragged/padding path.  grid = cdiv(2000, 1024) = 2 (keeps both v7x TCs busy).
    N = 2000
    x = jax.random.uniform(kx, (N, 1), dtype=jnp.float32)
    t = jax.random.uniform(kt, (N, 1), dtype=jnp.float32)

    params = init_params(LAYERS, kp)

    out = dnn_forward(x, t, params, tile_n=1024)
    out = jax.block_until_ready(out)

    ref = reference_forward(x, t, params)
    assert out.shape == (N, LAYERS[-1])
    assert jnp.allclose(out, ref, atol=1e-5, rtol=1e-5), "mismatch vs JAX reference"

    print("KERNEL_OK")
</pallas_src>

<mosaic_0001>
module attributes {stable_mosaic.version = 11 : i64} {
  func.func @kernel(%arg0: i32, %arg1: memref<2x1024xf32, #tpu.memory_space<vmem>>, %arg2: memref<32x2xf32, #tpu.memory_space<vmem>>, %arg3: memref<32x1xf32, #tpu.memory_space<vmem>>, %arg4: memref<32x32xf32, #tpu.memory_space<vmem>>, %arg5: memref<32x1xf32, #tpu.memory_space<vmem>>, %arg6: memref<32x32xf32, #tpu.memory_space<vmem>>, %arg7: memref<32x1xf32, #tpu.memory_space<vmem>>, %arg8: memref<1x32xf32, #tpu.memory_space<vmem>>, %arg9: memref<1x1xf32, #tpu.memory_space<vmem>>, %arg10: memref<1x1024xf32, #tpu.memory_space<vmem>>) attributes {dimension_semantics = [#tpu.dimension_semantics<parallel>], iteration_bounds = array<i64: 2>, scalar_prefetch = 0 : i64, scratch_operands = 0 : i64, tpu.core_type = #tpu.core_type<tc>, window_params = [{transform_indices = @transform_0, window_bounds = array<i64: 2, 1024>}, {pipeline_mode = #tpu.pipeline_mode<synchronous>, transform_indices = @transform_1, window_bounds = array<i64: 32, 2>}, {pipeline_mode = #tpu.pipeline_mode<synchronous>, transform_indices = @transform_2, window_bounds = array<i64: 32, 1>}, {pipeline_mode = #tpu.pipeline_mode<synchronous>, transform_indices = @transform_3, window_bounds = array<i64: 32, 32>}, {pipeline_mode = #tpu.pipeline_mode<synchronous>, transform_indices = @transform_4, window_bounds = array<i64: 32, 1>}, {pipeline_mode = #tpu.pipeline_mode<synchronous>, transform_indices = @transform_5, window_bounds = array<i64: 32, 32>}, {pipeline_mode = #tpu.pipeline_mode<synchronous>, transform_indices = @transform_6, window_bounds = array<i64: 32, 1>}, {pipeline_mode = #tpu.pipeline_mode<synchronous>, transform_indices = @transform_7, window_bounds = array<i64: 1, 32>}, {pipeline_mode = #tpu.pipeline_mode<synchronous>, transform_indices = @transform_8, window_bounds = array<i64: 1, 1>}, {transform_indices = @transform_9, window_bounds = array<i64: 1, 1024>}]} {
    %c0 = arith.constant 0 : index
    %c0_0 = arith.constant 0 : index
    %0 = vector.load %arg1[%c0, %c0_0] : memref<2x1024xf32, #tpu.memory_space<vmem>>, vector<2x1024xf32>
    %c0_1 = arith.constant 0 : index
    %c0_2 = arith.constant 0 : index
    %1 = vector.load %arg2[%c0_1, %c0_2] : memref<32x2xf32, #tpu.memory_space<vmem>>, vector<32x2xf32>
    %c0_3 = arith.constant 0 : index
    %c0_4 = arith.constant 0 : index
    %2 = vector.load %arg3[%c0_3, %c0_4] : memref<32x1xf32, #tpu.memory_space<vmem>>, vector<32x1xf32>
    %cst = arith.constant dense<0.000000e+00> : vector<32x1024xf32>
    %3 = tpu.matmul %1, %0, %cst {dimension_numbers = #tpu.dot_dimension_numbers<[1], [0], [0], [1], [0, 0, 1, 1], [], []>} : vector<32x2xf32>, vector<2x1024xf32>, vector<32x1024xf32> -> vector<32x1024xf32>
    %4 = vector.broadcast %2 : vector<32x1xf32> to vector<32x1024xf32>
    %5 = arith.addf %3, %4 : vector<32x1024xf32>
    %6 = math.tanh %5 : vector<32x1024xf32>
    %c0_5 = arith.constant 0 : index
    %c0_6 = arith.constant 0 : index
    %7 = vector.load %arg4[%c0_5, %c0_6] : memref<32x32xf32, #tpu.memory_space<vmem>>, vector<32x32xf32>
    %c0_7 = arith.constant 0 : index
    %c0_8 = arith.constant 0 : index
    %8 = vector.load %arg5[%c0_7, %c0_8] : memref<32x1xf32, #tpu.memory_space<vmem>>, vector<32x1xf32>
    %cst_9 = arith.constant dense<0.000000e+00> : vector<32x1024xf32>
    %9 = tpu.matmul %7, %6, %cst_9 {dimension_numbers = #tpu.dot_dimension_numbers<[1], [0], [0], [1], [0, 0, 1, 1], [], []>} : vector<32x32xf32>, vector<32x1024xf32>, vector<32x1024xf32> -> vector<32x1024xf32>
    %10 = vector.broadcast %8 : vector<32x1xf32> to vector<32x1024xf32>
    %11 = arith.addf %9, %10 : vector<32x1024xf32>
    %12 = math.tanh %11 : vector<32x1024xf32>
    %c0_10 = arith.constant 0 : index
    %c0_11 = arith.constant 0 : index
    %13 = vector.load %arg6[%c0_10, %c0_11] : memref<32x32xf32, #tpu.memory_space<vmem>>, vector<32x32xf32>
    %c0_12 = arith.constant 0 : index
    %c0_13 = arith.constant 0 : index
    %14 = vector.load %arg7[%c0_12, %c0_13] : memref<32x1xf32, #tpu.memory_space<vmem>>, vector<32x1xf32>
    %cst_14 = arith.constant dense<0.000000e+00> : vector<32x1024xf32>
    %15 = tpu.matmul %13, %12, %cst_14 {dimension_numbers = #tpu.dot_dimension_numbers<[1], [0], [0], [1], [0, 0, 1, 1], [], []>} : vector<32x32xf32>, vector<32x1024xf32>, vector<32x1024xf32> -> vector<32x1024xf32>
    %16 = vector.broadcast %14 : vector<32x1xf32> to vector<32x1024xf32>
    %17 = arith.addf %15, %16 : vector<32x1024xf32>
    %18 = math.tanh %17 : vector<32x1024xf32>
    %c0_15 = arith.constant 0 : index
    %c0_16 = arith.constant 0 : index
    %19 = vector.load %arg8[%c0_15, %c0_16] : memref<1x32xf32, #tpu.memory_space<vmem>>, vector<1x32xf32>
    %c0_17 = arith.constant 0 : index
    %c0_18 = arith.constant 0 : index
    %20 = vector.load %arg9[%c0_17, %c0_18] : memref<1x1xf32, #tpu.memory_space<vmem>>, vector<1x1xf32>
    %cst_19 = arith.constant dense<0.000000e+00> : vector<1x1024xf32>
    %21 = tpu.matmul %19, %18, %cst_19 {dimension_numbers = #tpu.dot_dimension_numbers<[1], [0], [0], [1], [0, 0, 1, 1], [], []>} : vector<1x32xf32>, vector<32x1024xf32>, vector<1x1024xf32> -> vector<1x1024xf32>
    %22 = vector.broadcast %20 : vector<1x1xf32> to vector<1x1024xf32>
    %23 = arith.addf %21, %22 : vector<1x1024xf32>
    %c0_20 = arith.constant 0 : index
    %c0_21 = arith.constant 0 : index
    %24 = vector.load %arg10[%c0_20, %c0_21] : memref<1x1024xf32, #tpu.memory_space<vmem>>, vector<1x1024xf32>
    tpu.vector_store %arg10[%c0_20, %c0_21], %23 {strides = array<i32>} : memref<1x1024xf32, #tpu.memory_space<vmem>>, vector<1x1024xf32>,
    return
  }
  func.func @transform_0(%arg0: i32) -> (i32, i32) {
    %c0_i32 = arith.constant 0 : i32
    %c0_i32_0 = arith.constant 0 : i32
    return %c0_i32, %arg0 : i32, i32
  }
  func.func @transform_1(%arg0: i32) -> (i32, i32) {
    %c0_i32 = arith.constant 0 : i32
    %c0_i32_0 = arith.constant 0 : i32
    %c0_i32_1 = arith.constant 0 : i32
    return %c0_i32, %c0_i32_0 : i32, i32
  }
  func.func @transform_2(%arg0: i32) -> (i32, i32) {
    %c0_i32 = arith.constant 0 : i32
    %c0_i32_0 = arith.constant 0 : i32
    %c0_i32_1 = arith.constant 0 : i32
    return %c0_i32, %c0_i32_0 : i32, i32
  }
  func.func @transform_3(%arg0: i32) -> (i32, i32) {
    %c0_i32 = arith.constant 0 : i32
    %c0_i32_0 = arith.constant 0 : i32
    %c0_i32_1 = arith.constant 0 : i32
    return %c0_i32, %c0_i32_0 : i32, i32
  }
  func.func @transform_4(%arg0: i32) -> (i32, i32) {
    %c0_i32 = arith.constant 0 : i32
    %c0_i32_0 = arith.constant 0 : i32
    %c0_i32_1 = arith.constant 0 : i32
    return %c0_i32, %c0_i32_0 : i32, i32
  }
  func.func @transform_5(%arg0: i32) -> (i32, i32) {
    %c0_i32 = arith.constant 0 : i32
    %c0_i32_0 = arith.constant 0 : i32
    %c0_i32_1 = arith.constant 0 : i32
    return %c0_i32, %c0_i32_0 : i32, i32
  }
  func.func @transform_6(%arg0: i32) -> (i32, i32) {
    %c0_i32 = arith.constant 0 : i32
    %c0_i32_0 = arith.constant 0 : i32
    %c0_i32_1 = arith.constant 0 : i32
    return %c0_i32, %c0_i32_0 : i32, i32
  }
  func.func @transform_7(%arg0: i32) -> (i32, i32) {
    %c0_i32 = arith.constant 0 : i32
    %c0_i32_0 = arith.constant 0 : i32
    %c0_i32_1 = arith.constant 0 : i32
    return %c0_i32, %c0_i32_0 : i32, i32
  }
  func.func @transform_8(%arg0: i32) -> (i32, i32) {
    %c0_i32 = arith.constant 0 : i32
    %c0_i32_0 = arith.constant 0 : i32
    %c0_i32_1 = arith.constant 0 : i32
    return %c0_i32, %c0_i32_0 : i32, i32
  }
  func.func @transform_9(%arg0: i32) -> (i32, i32) {
    %c0_i32 = arith.constant 0 : i32
    %c0_i32_0 = arith.constant 0 : i32
    return %c0_i32, %arg0 : i32, i32
  }
}

</mosaic_0001>

<llo_original>
// kernel: tpu_custom_call.1
$region0: #{tpu_custom_call.1}
  #allocation0 [shape = 'u32[]', space=smem, size = 0x4, offset = 0x4, fixed_abs, tag = 'smem constant byte address 0x4 - core index']
  #allocation1 [shape = 'u32[144,128]{1,0:T(1,128)}', space=vmem, size = 0x12000, scoped, tag = 'internal scratch']
  #allocation2 [shape = 'f32[1,1]{1,0:T(1,128)S(1)}', space=vmem, size = 0x200, scoped, tag = 'scoped memory for tpu_custom_call.1']
  %s0 = inlined_call_operand.vmem [shape: f32[2,2048], index: 0, kind: input, shape index: {}]
  %s1 = inlined_call_operand.vmem [shape: f32[32,2], index: 1, kind: input, shape index: {}]
  %s2 = inlined_call_operand.vmem [shape: f32[32,1], index: 2, kind: input, shape index: {}]
  %s3 = inlined_call_operand.vmem [shape: f32[32,32], index: 3, kind: input, shape index: {}]
  %s4 = inlined_call_operand.vmem [shape: f32[32,1], index: 4, kind: input, shape index: {}]
  %s5 = inlined_call_operand.vmem [shape: f32[32,32], index: 5, kind: input, shape index: {}]
  %s6 = inlined_call_operand.vmem [shape: f32[32,1], index: 6, kind: input, shape index: {}]
  %s7 = inlined_call_operand.vmem [shape: f32[1,32], index: 7, kind: input, shape index: {}]
  %s8 = inlined_call_operand.<no memory space> [shape: f32[1,1], index: 8, kind: input, shape index: {}]
  %s9 = inlined_call_operand.hbm [shape: f32[1,2048], index: 9, kind: output, shape index: {}]
  %s10 = sld [smem:[#allocation0]]
  $region69: #{tpu_custom_call.1} parent=0
    _
  %s12 = ssub.s32 1, %s10
  %s13 = scalar_select 0, %s12, %s10
  %v14 = vstv %s8
  %15 = vst [vmem:[#allocation2] sm:$0x1] %v14
  $region1: #{tpu_custom_call.1} parent=0
    #allocation3 [shape = 'u8[8192]{0}', space=vmem, size = 0x2000, scoped, tag = 'output window, operand 0']
    #allocation4 [shape = 's32[2]{0}', space=sflag, size = 0x8, scoped, tag = 'scoped memory for tpu_custom_call.1']
    %16 = vsyncpa [#allocation4], 0
    %s17 = scalar_lea.sflag [#allocation4], 1
    %18 = vsyncpa %s17, 0
    loop: start=0, step=1, limit=4
    $region2: #{tpu_custom_call.1} parent=1 // loop_pre_header
      _
    $region3: #{tpu_custom_call.1} parent=1 // loop_header
      %s20 = sphi 0, %s24
      %p21 = scmp.ge.s32.totalorder %s20, 4
      %s30 = sphi 0, %s32
      %s33 = sphi 0, %s30
      %s34 = sphi 0, %s33
      %s50 = sphi 0, %s34
      %s54 = sphi 0, %s54
      %s56 = sphi 0, %s54
      %s57 = sphi 0, %s56
      %s71 = sphi 0, %s57
      %s75 = sphi 0, %s75
      %s77 = sphi 0, %s75
      %s78 = sphi 0, %s77
      %s92 = sphi 0, %s78
      %s96 = sphi 0, %s96
      %s98 = sphi 0, %s96
      %s99 = sphi 0, %s98
      %s113 = sphi 0, %s99
      %s117 = sphi 0, %s117
      %s119 = sphi 0, %s117
      %s120 = sphi 0, %s119
      %s134 = sphi 0, %s120
      %s138 = sphi 0, %s138
      %s140 = sphi 0, %s138
      %s141 = sphi 0, %s140
      %s155 = sphi 0, %s141
      %s159 = sphi 0, %s159
      %s161 = sphi 0, %s159
      %s162 = sphi 0, %s161
      %s176 = sphi 0, %s162
      %s180 = sphi 0, %s180
      %s182 = sphi 0, %s180
      %s183 = sphi 0, %s182
      %s197 = sphi 0, %s183
      %s201 = sphi 0, %s201
      %s203 = sphi 0, %s201
      %s204 = sphi 0, %s203
      %s218 = sphi 0, %s204
      %s224 = sphi 0, %s226
      %s227 = sphi 0, %s224
      %s228 = sphi 0, %s227
      %s244 = sphi 0, %s228
    $region4: #{tpu_custom_call.1} parent=1 // loop_header_branch
      %23 = sbr.rel (%p21) target = $region8
    $region5: #{tpu_custom_call.1} parent=1 // loop_body
      %s25 = ssub.s32 %s20, 1
      %s26 = ssub.s32 %s20, 2
      %s27 = sadd.s32 %s20, 1
      %s28 = ssub.s32 %s20, %s27
      %p29 = scmp.eq.s32.totalorder %s28, 0
      %s31 = sadd.s32 %s30, 1
      %s32 = scalar_select %p29, %s30, %s31
      %p35 = pneg %p29
      %p36 = scmp.eq.s32.totalorder %s20, 1
      %p37 = por %p35, %p36
      %p38 = scmp.ne.s32.totalorder %s30, %s33
      %p39 = scmp.eq.s32.totalorder %s20, 0
      %p40 = por %p38, %p39
      %p41 = scmp.ne.s32.totalorder %s30, %s33
      %p42 = scmp.eq.s32.totalorder %s25, 1
      %p43 = por %p41, %p42
      %p44 = scmp.ne.s32.totalorder %s33, %s34
      %p45 = scmp.eq.s32.totalorder %s25, 0
      %p46 = por %p44, %p45
      %p47 = scmp.ne.s32.totalorder %s33, %s34
      %p48 = scmp.eq.s32.totalorder %s26, 1
      %p49 = por %p47, %p48
      %p51 = scmp.ne.s32.totalorder %s34, %s50
      %p52 = scmp.eq.s32.totalorder %s26, 0
      %p53 = por %p51, %p52
      %s55 = sadd.s32 %s54, 1
      %p58 = scmp.eq.s32.totalorder %s20, 1
      %p59 = scmp.ne.s32.totalorder %s54, %s56
      %p60 = scmp.eq.s32.totalorder %s20, 0
      %p61 = por %p59, %p60
      %p62 = scmp.ne.s32.totalorder %s54, %s56
      %p63 = scmp.eq.s32.totalorder %s25, 1
      %p64 = por %p62, %p63
      %p65 = scmp.ne.s32.totalorder %s56, %s57
      %p66 = scmp.eq.s32.totalorder %s25, 0
      %p67 = por %p65, %p66
      %p68 = scmp.ne.s32.totalorder %s56, %s57
      %p69 = scmp.eq.s32.totalorder %s26, 1
      %p70 = por %p68, %p69
      %p72 = scmp.ne.s32.totalorder %s57, %s71
      %p73 = scmp.eq.s32.totalorder %s26, 0
      %p74 = por %p72, %p73
      %s76 = sadd.s32 %s75, 1
      %p79 = scmp.eq.s32.totalorder %s20, 1
      %p80 = scmp.ne.s32.totalorder %s75, %s77
      %p81 = scmp.eq.s32.totalorder %s20, 0
      %p82 = por %p80, %p81
      %p83 = scmp.ne.s32.totalorder %s75, %s77
      %p84 = scmp.eq.s32.totalorder %s25, 1
      %p85 = por %p83, %p84
      %p86 = scmp.ne.s32.totalorder %s77, %s78
      %p87 = scmp.eq.s32.totalorder %s25, 0
      %p88 = por %p86, %p87
      %p89 = scmp.ne.s32.totalorder %s77, %s78
      %p90 = scmp.eq.s32.totalorder %s26, 1
      %p91 = por %p89, %p90
      %p93 = scmp.ne.s32.totalorder %s78, %s92
      %p94 = scmp.eq.s32.totalorder %s26, 0
      %p95 = por %p93, %p94
      %s97 = sadd.s32 %s96, 1
      %p100 = scmp.eq.s32.totalorder %s20, 1
      %p101 = scmp.ne.s32.totalorder %s96, %s98
      %p102 = scmp.eq.s32.totalorder %s20, 0
      %p103 = por %p101, %p102
      %p104 = scmp.ne.s32.totalorder %s96, %s98
      %p105 = scmp.eq.s32.totalorder %s25, 1
      %p106 = por %p104, %p105
      %p107 = scmp.ne.s32.totalorder %s98, %s99
      %p108 = scmp.eq.s32.totalorder %s25, 0
      %p109 = por %p107, %p108
      %p110 = scmp.ne.s32.totalorder %s98, %s99
      %p111 = scmp.eq.s32.totalorder %s26, 1
      %p112 = por %p110, %p111
      %p114 = scmp.ne.s32.totalorder %s99, %s113
      %p115 = scmp.eq.s32.totalorder %s26, 0
      %p116 = por %p114, %p115
      %s118 = sadd.s32 %s117, 1
      %p121 = scmp.eq.s32.totalorder %s20, 1
      %p122 = scmp.ne.s32.totalorder %s117, %s119
      %p123 = scmp.eq.s32.totalorder %s20, 0
      %p124 = por %p122, %p123
      %p125 = scmp.ne.s32.totalorder %s117, %s119
      %p126 = scmp.eq.s32.totalorder %s25, 1
      %p127 = por %p125, %p126
      %p128 = scmp.ne.s32.totalorder %s119, %s120
      %p129 = scmp.eq.s32.totalorder %s25, 0
      %p130 = por %p128, %p129
      %p131 = scmp.ne.s32.totalorder %s119, %s120
      %p132 = scmp.eq.s32.totalorder %s26, 1
      %p133 = por %p131, %p132
      %p135 = scmp.ne.s32.totalorder %s120, %s134
      %p136 = scmp.eq.s32.totalorder %s26, 0
      %p137 = por %p135, %p136
      %s139 = sadd.s32 %s138, 1
      %p142 = scmp.eq.s32.totalorder %s20, 1
      %p143 = scmp.ne.s32.totalorder %s138, %s140
      %p144 = scmp.eq.s32.totalorder %s20, 0
      %p145 = por %p143, %p144
      %p146 = scmp.ne.s32.totalorder %s138, %s140
      %p147 = scmp.eq.s32.totalorder %s25, 1
      %p148 = por %p146, %p147
      %p149 = scmp.ne.s32.totalorder %s140, %s141
      %p150 = scmp.eq.s32.totalorder %s25, 0
      %p151 = por %p149, %p150
      %p152 = scmp.ne.s32.totalorder %s140, %s141
      %p153 = scmp.eq.s32.totalorder %s26, 1
      %p154 = por %p152, %p153
      %p156 = scmp.ne.s32.totalorder %s141, %s155
      %p157 = scmp.eq.s32.totalorder %s26, 0
      %p158 = por %p156, %p157
      %s160 = sadd.s32 %s159, 1
      %p163 = scmp.eq.s32.totalorder %s20, 1
      %p164 = scmp.ne.s32.totalorder %s159, %s161
      %p165 = scmp.eq.s32.totalorder %s20, 0
      %p166 = por %p164, %p165
      %p167 = scmp.ne.s32.totalorder %s159, %s161
      %p168 = scmp.eq.s32.totalorder %s25, 1
      %p169 = por %p167, %p168
      %p170 = scmp.ne.s32.totalorder %s161, %s162
      %p171 = scmp.eq.s32.totalorder %s25, 0
      %p172 = por %p170, %p171
      %p173 = scmp.ne.s32.totalorder %s161, %s162
      %p174 = scmp.eq.s32.totalorder %s26, 1
      %p175 = por %p173, %p174
      %p177 = scmp.ne.s32.totalorder %s162, %s176
      %p178 = scmp.eq.s32.totalorder %s26, 0
      %p179 = por %p177, %p178
      %s181 = sadd.s32 %s180, 1
      %p184 = scmp.eq.s32.totalorder %s20, 1
      %p185 = scmp.ne.s32.totalorder %s180, %s182
      %p186 = scmp.eq.s32.totalorder %s20, 0
      %p187 = por %p185, %p186
      %p188 = scmp.ne.s32.totalorder %s180, %s182
      %p189 = scmp.eq.s32.totalorder %s25, 1
      %p190 = por %p188, %p189
      %p191 = scmp.ne.s32.totalorder %s182, %s183
      %p192 = scmp.eq.s32.totalorder %s25, 0
      %p193 = por %p191, %p192
      %p194 = scmp.ne.s32.totalorder %s182, %s183
      %p195 = scmp.eq.s32.totalorder %s26, 1
      %p196 = por %p194, %p195
      %p198 = scmp.ne.s32.totalorder %s183, %s197
      %p199 = scmp.eq.s32.totalorder %s26, 0
      %p200 = por %p198, %p199
      %s202 = sadd.s32 %s201, 1
      %p205 = scmp.eq.s32.totalorder %s20, 1
      %p206 = scmp.ne.s32.totalorder %s201, %s203
      %p207 = scmp.eq.s32.totalorder %s20, 0
      %p208 = por %p206, %p207
      %p209 = scmp.ne.s32.totalorder %s201, %s203
      %p210 = scmp.eq.s32.totalorder %s25, 1
      %p211 = por %p209, %p210
      %p212 = scmp.ne.s32.totalorder %s203, %s204
      %p213 = scmp.eq.s32.totalorder %s25, 0
      %p214 = por %p212, %p213
      %p215 = scmp.ne.s32.totalorder %s203, %s204
      %p216 = scmp.eq.s32.totalorder %s26, 1
      %p217 = por %p215, %p216
      %p219 = scmp.ne.s32.totalorder %s204, %s218
      %p220 = scmp.eq.s32.totalorder %s26, 0
      %p221 = por %p219, %p220
      %s222 = ssub.s32 %s20, %s27
      %p223 = scmp.eq.s32.totalorder %s222, 0
      %s225 = sadd.s32 %s224, 1
      %s226 = scalar_select %p223, %s224, %s225
      %p229 = pneg %p223
      %p230 = scmp.eq.s32.totalorder %s20, 1
      %p231 = por %p229, %p230
      %p232 = scmp.ne.s32.totalorder %s224, %s227
      %p233 = scmp.eq.s32.totalorder %s20, 0
      %p234 = por %p232, %p233
      %p235 = scmp.ne.s32.totalorder %s224, %s227
      %p236 = scmp.eq.s32.totalorder %s25, 1
      %p237 = por %p235, %p236
      %p238 = scmp.ne.s32.totalorder %s227, %s228
      %p239 = scmp.eq.s32.totalorder %s25, 0
      %p240 = por %p238, %p239
      %p241 = scmp.ne.s32.totalorder %s227, %s228
      %p242 = scmp.eq.s32.totalorder %s26, 1
      %p243 = por %p241, %p242
      %p245 = scmp.ne.s32.totalorder %s228, %s244
      %p246 = scmp.eq.s32.totalorder %s26, 0
      %p247 = por %p245, %p246
      %p248 = scmp.le.s32.totalorder 1, %s20
      %p249 = scmp.lt.s32.totalorder %s20, 3
      %p250 = pnand %p248, %p249
      %p251 = pneg %p250
      // Predicated region
      $region9: #{tpu_custom_call.1} parent=5 // pred_check
        _
      $region10: #{tpu_custom_call.1} parent=5 // pred_check_branch
        %253 = sbr.rel (%p250) target = $region12
      $region11: #{tpu_custom_call.1} parent=5 // pred_region
        %s254 = ssub.s32 %s20, 1
        // Predicated region
        $region13: #{tpu_custom_call.1} parent=11 // pred_check
          %p255 = pneg %p67
        $region14: #{tpu_custom_call.1} parent=11 // pred_check_branch
          %257 = sbr.rel (%p255) target = $region16
        $region15: #{tpu_custom_call.1} parent=11 // pred_region
          _
        $region16: #{tpu_custom_call.1} parent=11 // pred_fallthru
          _
        // Predicated region
        $region17: #{tpu_custom_call.1} parent=11 // pred_check
          %p258 = pneg %p88
        $region18: #{tpu_custom_call.1} parent=11 // pred_check_branch
          %260 = sbr.rel (%p258) target = $region20
        $region19: #{tpu_custom_call.1} parent=11 // pred_region
          _
        $region20: #{tpu_custom_call.1} parent=11 // pred_fallthru
          _
        // Predicated region
        $region21: #{tpu_custom_call.1} parent=11 // pred_check
          %p261 = pneg %p109
        $region22: #{tpu_custom_call.1} parent=11 // pred_check_branch
          %263 = sbr.rel (%p261) target = $region24
        $region23: #{tpu_custom_call.1} parent=11 // pred_region
          _
        $region24: #{tpu_custom_call.1} parent=11 // pred_fallthru
          _
        // Predicated region
        $region25: #{tpu_custom_call.1} parent=11 // pred_check
          %p264 = pneg %p130
        $region26: #{tpu_custom_call.1} parent=11 // pred_check_branch
          %266 = sbr.rel (%p264) target = $region28
        $region27: #{tpu_custom_call.1} parent=11 // pred_region
          _
        $region28: #{tpu_custom_call.1} parent=11 // pred_fallthru
          _
        // Predicated region
        $region29: #{tpu_custom_call.1} parent=11 // pred_check
          %p267 = pneg %p151
        $region30: #{tpu_custom_call.1} parent=11 // pred_check_branch
          %269 = sbr.rel (%p267) target = $region32
        $region31: #{tpu_custom_call.1} parent=11 // pred_region
          _
        $region32: #{tpu_custom_call.1} parent=11 // pred_fallthru
          _
        // Predicated region
        $region33: #{tpu_custom_call.1} parent=11 // pred_check
          %p270 = pneg %p172
        $region34: #{tpu_custom_call.1} parent=11 // pred_check_branch
          %272 = sbr.rel (%p270) target = $region36
        $region35: #{tpu_custom_call.1} parent=11 // pred_region
          _
        $region36: #{tpu_custom_call.1} parent=11 // pred_fallthru
          _
        // Predicated region
        $region37: #{tpu_custom_call.1} parent=11 // pred_check
          %p273 = pneg %p193
        $region38: #{tpu_custom_call.1} parent=11 // pred_check_branch
          %275 = sbr.rel (%p273) target = $region40
        $region39: #{tpu_custom_call.1} parent=11 // pred_region
          _
        $region40: #{tpu_custom_call.1} parent=11 // pred_fallthru
          _
        // Predicated region
        $region41: #{tpu_custom_call.1} parent=11 // pred_check
          %p276 = pneg %p214
        $region42: #{tpu_custom_call.1} parent=11 // pred_check_branch
          %278 = sbr.rel (%p276) target = $region44
        $region43: #{tpu_custom_call.1} parent=11 // pred_region
          _
        $region44: #{tpu_custom_call.1} parent=11 // pred_fallthru
          _
      $region12: #{tpu_custom_call.1} parent=5 // pred_fallthru
        _
      %p279 = scmp.lt.s32.totalorder %s20, 2
      // Predicated region
      $region45: #{tpu_custom_call.1} parent=5 // pred_check
        %p280 = pneg %p279
      $region46: #{tpu_custom_call.1} parent=5 // pred_check_branch
        %282 = sbr.rel (%p280) target = $region48
      $region47: #{tpu_custom_call.1} parent=5 // pred_region
        // Predicated region
        $region49: #{tpu_custom_call.1} parent=47 // pred_check
          %p283 = pneg %p40
        $region50: #{tpu_custom_call.1} parent=47 // pred_check_branch
          %285 = sbr.rel (%p283) target = $region52
        $region51: #{tpu_custom_call.1} parent=47 // pred_region
          %s286 = smul.u32 8, %s20
          %p287 = scmp.lt.s32.totalorder %s286, 15
          %s288 = scalar_select %p287, %s286, 15
          %s289 = smul.addr %s288, 2
          %s290 = scalar_lea.vmem %s0, %s289
          %s291 = smul.u32 8, %s20
        $region52: #{tpu_custom_call.1} parent=47 // pred_fallthru
          _
      $region48: #{tpu_custom_call.1} parent=5 // pred_fallthru
        _
      %p292 = scmp.le.s32.totalorder 1, %s20
      %p293 = scmp.lt.s32.totalorder %s20, 3
      %p294 = pnand %p292, %p293
      %p295 = pneg %p294
      // Predicated region
      $region53: #{tpu_custom_call.1} parent=5 // pred_check
        _
      $region54: #{tpu_custom_call.1} parent=5 // pred_check_branch
        %297 = sbr.rel (%p294) target = $region56
      $region55: #{tpu_custom_call.1} parent=5 // pred_region
        %s298 = ssub.s32 %s20, 1
        %s299 = smul.u32 8, %s25
        %p300 = scmp.lt.s32.totalorder %s299, 15
        %s301 = scalar_select %p300, %s299, 15
        %s302 = smul.addr %s301, 2
        %s303 = scalar_lea.vmem %s0, %s302
        %p304 = pneg %p46
        %p305 = pneg %p43
        %p306 = pneg %p67
        %p307 = pneg %p64
        %p308 = pneg %p88
        %p309 = pneg %p85
        %p310 = pneg %p109
        %p311 = pneg %p106
        %p312 = pneg %p130
        %p313 = pneg %p127
        %p314 = pneg %p151
        %p315 = pneg %p148
        %p316 = pneg %p172
        %p317 = pneg %p169
        %p318 = pneg %p193
        %p319 = pneg %p190
        %p320 = pneg %p214
        %p321 = pneg %p211
        %p322 = pneg %p240
        %p323 = pneg %p237
        %s324 = sand.u32 %s227, 1
        %s325 = scalar_lea.sflag [#allocation4], %s324
        %s326 = sand.u32 %s227, 1
        %s327 = smul.addr %s326, 8
        %s328 = scalar_lea.vmem [#allocation3], %s327
        %s329 = smul.u32 8, %s25
        %p330 = scmp.lt.s32.totalorder %s329, 15
        %s331 = scalar_select %p330, %s329, 15
        %s332 = smul.addr %s331, 2
        %s333 = scalar_lea.vmem %s0, %s332
        %s334 = smul.u32 8, %s25
        %s335 = smul.u32 8, %s25
        %v336 = vld [vmem:[%s333] sm:$0xff]
        %v337 = vld [vmem:[%s333 + $0x8] sm:$0xff]
        %v338 = vld [vmem:[%s1] sm:$0xff]
        %v339 = vld [vmem:[%s1 + $0x8] sm:$0xff]
        %v340 = vld [vmem:[%s1 + $0x10] sm:$0xff]
        %v341 = vld [vmem:[%s1 + $0x18] sm:$0xff]
        %v342 = vld [vmem:[%s2] sm:$0xff]
        %v343 = vld [vmem:[%s2 + $0x8] sm:$0xff]
        %v344 = vld [vmem:[%s2 + $0x10] sm:$0xff]
        %v345 = vld [vmem:[%s2 + $0x18] sm:$0xff]
        %347 = vset.pattern.permute.xlu0 0
        %348 = vperm.xlu0 %347, %v342
        %v349 = vpop.permute.xlu0 %348
        %352 = vset.pattern.permute.xlu0 0
        %353 = vperm.xlu0 %352, %v343
        %v354 = vpop.permute.xlu0 %353
        %357 = vset.pattern.permute.xlu0 0
        %358 = vperm.xlu0 %357, %v344
        %v359 = vpop.permute.xlu0 %358
        %362 = vset.pattern.permute.xlu0 0
        %363 = vperm.xlu0 %362, %v345
        %v364 = vpop.permute.xlu0 %363
        %v368 = vcombine.high %v336, %v336
        %v370 = vunpack.c.l.s4 1983009808
        %v371 = vunpack.c.0.s8 %v370
        %v372 = vlaneseq
        %v373 = vshrl.u32 %v372, 7
        %v374 = vsub.s32 %v371, %v373
        %v375 = vrot.slane %v336, %v374
        %v377 = vunpack.c.l.s4 1983009808
        %v378 = vunpack.c.0.s8 %v377
        %v379 = vlaneseq
        %v380 = vshrl.u32 %v379, 7
        %v381 = vsub.s32 %v378, %v380
        %v382 = vrot.slane %v368, %v381
        %v383 = vcombine.high %v375, %v375
        %v384 = vcombine.high %v382, %v382
        %v385 = vcombine.high %v337, %v337
        %v387 = vunpack.c.l.s4 1983009808
        %v388 = vunpack.c.0.s8 %v387
        %v389 = vlaneseq
        %v390 = vshrl.u32 %v389, 7
        %v391 = vsub.s32 %v388, %v390
        %v392 = vrot.slane %v337, %v391
        %v394 = vunpack.c.l.s4 1983009808
        %v395 = vunpack.c.0.s8 %v394
        %v396 = vlaneseq
        %v397 = vshrl.u32 %v396, 7
        %v398 = vsub.s32 %v395, %v397
        %v399 = vrot.slane %v385, %v398
        %v400 = vcombine.high %v392, %v392
        %v401 = vcombine.high %v399, %v399
        %vm402 = vcmask 15360
        %v404 = vsel %vm402, %v338, 0
        %v407 = vsel %vm402, %v339, 0
        %v410 = vsel %vm402, %v340, 0
        %v413 = vsel %vm402, %v341, 0
        %vm415 = vcmask 1041408
        %v416 = vsel %vm415, %v375, 0
        %v418 = vsel %vm415, %v383, 0
        %v420 = vsel %vm415, %v382, 0
        %v422 = vsel %vm415, %v384, 0
        %v424 = vsel %vm415, %v392, 0
        %v426 = vsel %vm415, %v400, 0
        %v428 = vsel %vm415, %v399, 0
        %v430 = vsel %vm415, %v401, 0
        %432 = vmatprep.subr.mxu0 %v418
        %433 = vmatpush1.msra.mxu0 %v416
        %434 = vmatprep.subr.mxu0 0.0
        %435 = vmatpush1.msra.mxu0 0.0
        %436 = vmatprep.subr.mxu0 0.0
        %437 = vmatpush1.msra.mxu0 0.0
        %438 = vmatprep.subr.mxu0 0.0
        %439 = vmatpush1.msra.mxu0 0.0
        %440 = vmatprep.subr.mxu0 0.0
        %441 = vmatpush1.msra.mxu0 0.0
        %442 = vmatprep.subr.mxu0 0.0
        %443 = vmatpush1.msra.mxu0 0.0
        %444 = vmatprep.subr.mxu0 0.0
        %445 = vmatpush1.msra.mxu0 0.0
        %446 = vmatprep.subr.mxu0 0.0
        %447 = vmatpush1.msra.mxu0 0.0
        %448 = vmatprep.subr.mxu0 0.0
        %449 = vmatpush1.msra.mxu0 0.0
        %450 = vmatprep.subr.mxu0 0.0
        %451 = vmatpush1.msra.mxu0 0.0
        %452 = vmatprep.subr.mxu0 0.0
        %453 = vmatpush1.msra.mxu0 0.0
        %454 = vmatprep.subr.mxu0 0.0
        %455 = vmatpush1.msra.mxu0 0.0
        %456 = vmatprep.subr.mxu0 0.0
        %457 = vmatpush1.msra.mxu0 0.0
        %458 = vmatprep.subr.mxu0 0.0
        %459 = vmatpush1.msra.mxu0 0.0
        %460 = vmatprep.subr.mxu0 0.0
        %461 = vmatpush1.msra.mxu0 0.0
        %462 = vmatprep.subr.mxu0 0.0
        %463 = vmatpush1.msra.mxu0 0.0
        %464 = vmatprep.subr.mxu0 0.0
        %465 = vmatpush1.msra.mxu0 0.0
        %466 = vmatprep.subr.mxu0 0.0
        %467 = vmatpush1.msra.mxu0 0.0
        %468 = vmatprep.subr.mxu0 0.0
        %469 = vmatpush1.msra.mxu0 0.0
        %470 = vmatprep.subr.mxu0 0.0
        %471 = vmatpush1.msra.mxu0 0.0
        %472 = vmatprep.subr.mxu0 0.0
        %473 = vmatpush1.msra.mxu0 0.0
        %474 = vmatprep.subr.mxu0 0.0
        %475 = vmatpush1.msra.mxu0 0.0
        %476 = vmatprep.subr.mxu0 0.0
        %477 = vmatpush1.msra.mxu0 0.0
        %478 = vmatprep.subr.mxu0 0.0
        %479 = vmatpush1.msra.mxu0 0.0
        %480 = vmatprep.subr.mxu0 0.0
        %481 = vmatpush1.msra.mxu0 0.0
        %482 = vmatprep.subr.mxu0 0.0
        %483 = vmatpush1.msra.mxu0 0.0
        %484 = vmatprep.subr.mxu0 0.0
        %485 = vmatpush1.msra.mxu0 0.0
        %486 = vmatprep.subr.mxu0 0.0
        %487 = vmatpush1.msra.mxu0 0.0
        %488 = vmatprep.subr.mxu0 0.0
        %489 = vmatpush1.msra.mxu0 0.0
        %490 = vmatprep.subr.mxu0 0.0
        %491 = vmatpush1.msra.mxu0 0.0
        %492 = vmatprep.subr.mxu0 0.0
        %493 = vmatpush1.msra.mxu0 0.0
        %494 = vmatprep.subr.mxu0 0.0
        %495 = vmatpush1.msra.mxu0 0.0
        %496 = vmatprep.mubr.f32.mxu0 0.0
        %497 = vmatmul.mubr.f32.gmra.mrb[0].mxu0 %v404
        %v498 = vpop.f32.mrb[0].mxu0
        %v499 = vadd.f32 %v349, %v498
        %v500 = vpop.f32.mrb[0].mxu0
        %v501 = vadd.f32 %v349, %v500
        %502 = vmatprep.mubr.f32.mxu0 0.0
        %503 = vmatmul.mubr.f32.gmra.mrb[0].mxu0 %v407
        %v504 = vpop.f32.mrb[0].mxu0
        %v505 = vadd.f32 %v354, %v504
        %v506 = vpop.f32.mrb[0].mxu0
        %v507 = vadd.f32 %v354, %v506
        %508 = vmatprep.mubr.f32.mxu0 0.0
        %509 = vmatmul.mubr.f32.gmra.mrb[0].mxu0 %v410
        %v510 = vpop.f32.mrb[0].mxu0
        %v511 = vadd.f32 %v359, %v510
        %v512 = vpop.f32.mrb[0].mxu0
        %v513 = vadd.f32 %v359, %v512
        %514 = vmatprep.mubr.f32.mxu0 0.0
        %515 = vmatmul.mubr.f32.gmra.mrb[0].mxu0 %v413
        %v516 = vpop.f32.mrb[0].mxu0
        %v517 = vadd.f32 %v364, %v516
        %v518 = vpop.f32.mrb[0].mxu0
        %v519 = vadd.f32 %v364, %v518
        %520 = vdwg.mxu0
        %521 = vmatprep.subr.mxu0 %v422
        %522 = vmatpush1.msra.mxu0 %v420
        %523 = vmatprep.subr.mxu0 0.0
        %524 = vmatpush1.msra.mxu0 0.0
        %525 = vmatprep.subr.mxu0 0.0
        %526 = vmatpush1.msra.mxu0 0.0
        %527 = vmatprep.subr.mxu0 0.0
        %528 = vmatpush1.msra.mxu0 0.0
        %529 = vmatprep.subr.mxu0 0.0
        %530 = vmatpush1.msra.mxu0 0.0
        %531 = vmatprep.subr.mxu0 0.0
        %532 = vmatpush1.msra.mxu0 0.0
        %533 = vmatprep.subr.mxu0 0.0
        %534 = vmatpush1.msra.mxu0 0.0
        %535 = vmatprep.subr.mxu0 0.0
        %536 = vmatpush1.msra.mxu0 0.0
        %537 = vmatprep.subr.mxu0 0.0
        %538 = vmatpush1.msra.mxu0 0.0
        %539 = vmatprep.subr.mxu0 0.0
        %540 = vmatpush1.msra.mxu0 0.0
        %541 = vmatprep.subr.mxu0 0.0
        %542 = vmatpush1.msra.mxu0 0.0
        %543 = vmatprep.subr.mxu0 0.0
        %544 = vmatpush1.msra.mxu0 0.0
        %545 = vmatprep.subr.mxu0 0.0
        %546 = vmatpush1.msra.mxu0 0.0
        %547 = vmatprep.subr.mxu0 0.0
        %548 = vmatpush1.msra.mxu0 0.0
        %549 = vmatprep.subr.mxu0 0.0
        %550 = vmatpush1.msra.mxu0 0.0
        %551 = vmatprep.subr.mxu0 0.0
        %552 = vmatpush1.msra.mxu0 0.0
        %553 = vmatprep.subr.mxu0 0.0
        %554 = vmatpush1.msra.mxu0 0.0
        %555 = vmatprep.subr.mxu0 0.0
        %556 = vmatpush1.msra.mxu0 0.0
        %557 = vmatprep.subr.mxu0 0.0
        %558 = vmatpush1.msra.mxu0 0.0
        %559 = vmatprep.subr.mxu0 0.0
        %560 = vmatpush1.msra.mxu0 0.0
        %561 = vmatprep.subr.mxu0 0.0
        %562 = vmatpush1.msra.mxu0 0.0
        %563 = vmatprep.subr.mxu0 0.0
        %564 = vmatpush1.msra.mxu0 0.0
        %565 = vmatprep.subr.mxu0 0.0
        %566 = vmatpush1.msra.mxu0 0.0
        %567 = vmatprep.subr.mxu0 0.0
        %568 = vmatpush1.msra.mxu0 0.0
        %569 = vmatprep.subr.mxu0 0.0
        %570 = vmatpush1.msra.mxu0 0.0
        %571 = vmatprep.subr.mxu0 0.0
        %572 = vmatpush1.msra.mxu0 0.0
        %573 = vmatprep.subr.mxu0 0.0
        %574 = vmatpush1.msra.mxu0 0.0
        %575 = vmatprep.subr.mxu0 0.0
        %576 = vmatpush1.msra.mxu0 0.0
        %577 = vmatprep.subr.mxu0 0.0
        %578 = vmatpush1.msra.mxu0 0.0
        %579 = vmatprep.subr.mxu0 0.0
        %580 = vmatpush1.msra.mxu0 0.0
        %581 = vmatprep.subr.mxu0 0.0
        %582 = vmatpush1.msra.mxu0 0.0
        %583 = vmatprep.subr.mxu0 0.0
        %584 = vmatpush1.msra.mxu0 0.0
        %585 = vmatprep.mubr.f32.mxu0 0.0
        %586 = vmatmul.mubr.f32.gmra.mrb[0].mxu0 %v404
        %v587 = vpop.f32.mrb[0].mxu0
        %v588 = vadd.f32 %v349, %v587
        %v589 = vpop.f32.mrb[0].mxu0
        %v590 = vadd.f32 %v349, %v589
        %591 = vmatprep.mubr.f32.mxu0 0.0
        %592 = vmatmul.mubr.f32.gmra.mrb[0].mxu0 %v407
        %v593 = vpop.f32.mrb[0].mxu0
        %v594 = vadd.f32 %v354, %v593
        %v595 = vpop.f32.mrb[0].mxu0
        %v596 = vadd.f32 %v354, %v595
        %597 = vmatprep.mubr.f32.mxu0 0.0
        %598 = vmatmul.mubr.f32.gmra.mrb[0].mxu0 %v410
        %v599 = vpop.f32.mrb[0].mxu0
        %v600 = vadd.f32 %v359, %v599
        %v601 = vpop.f32.mrb[0].mxu0
        %v602 = vadd.f32 %v359, %v601
        %603 = vmatprep.mubr.f32.mxu0 0.0
        %604 = vmatmul.mubr.f32.gmra.mrb[0].mxu0 %v413
        %v605 = vpop.f32.mrb[0].mxu0
        %v606 = vadd.f32 %v364, %v605
        %v607 = vpop.f32.mrb[0].mxu0
        %v608 = vadd.f32 %v364, %v607
        %609 = vdwg.mxu0
        %610 = vmatprep.subr.mxu0 %v426
        %611 = vmatpush1.msra.mxu0 %v424
        %612 = vmatprep.subr.mxu0 0.0
        %613 = vmatpush1.msra.mxu0 0.0
        %614 = vmatprep.subr.mxu0 0.0
        %615 = vmatpush1.msra.mxu0 0.0
        %616 = vmatprep.subr.mxu0 0.0
        %617 = vmatpush1.msra.mxu0 0.0
        %618 = vmatprep.subr.mxu0 0.0
        %619 = vmatpush1.msra.mxu0 0.0
        %620 = vmatprep.subr.mxu0 0.0
        %621 = vmatpush1.msra.mxu0 0.0
        %622 = vmatprep.subr.mxu0 0.0
        %623 = vmatpush1.msra.mxu0 0.0
        %624 = vmatprep.subr.mxu0 0.0
        %625 = vmatpush1.msra.mxu0 0.0
        %626 = vmatprep.subr.mxu0 0.0
        %627 = vmatpush1.msra.mxu0 0.0
        %628 = vmatprep.subr.mxu0 0.0
        %629 = vmatpush1.msra.mxu0 0.0
        %630 = vmatprep.subr.mxu0 0.0
        %631 = vmatpush1.msra.mxu0 0.0
        %632 = vmatprep.subr.mxu0 0.0
        %633 = vmatpush1.msra.mxu0 0.0
        %634 = vmatprep.subr.mxu0 0.0
        %635 = vmatpush1.msra.mxu0 0.0
        %636 = vmatprep.subr.mxu0 0.0
        %637 = vmatpush1.msra.mxu0 0.0
        %638 = vmatprep.subr.mxu0 0.0
        %639 = vmatpush1.msra.mxu0 0.0
        %640 = vmatprep.subr.mxu0 0.0
        %641 = vmatpush1.msra.mxu0 0.0
        %642 = vmatprep.subr.mxu0 0.0
        %643 = vmatpush1.msra.mxu0 0.0
        %644 = vmatprep.subr.mxu0 0.0
        %645 = vmatpush1.msra.mxu0 0.0
        %646 = vmatprep.subr.mxu0 0.0
        %647 = vmatpush1.msra.mxu0 0.0
        %648 = vmatprep.subr.mxu0 0.0
        %649 = vmatpush1.msra.mxu0 0.0
        %650 = vmatprep.subr.mxu0 0.0
        %651 = vmatpush1.msra.mxu0 0.0
        %652 = vmatprep.subr.mxu0 0.0
        %653 = vmatpush1.msra.mxu0 0.0
        %654 = vmatprep.subr.mxu0 0.0
        %655 = vmatpush1.msra.mxu0 0.0
        %656 = vmatprep.subr.mxu0 0.0
        %657 = vmatpush1.msra.mxu0 0.0
        %658 = vmatprep.subr.mxu0 0.0
        %659 = vmatpush1.msra.mxu0 0.0
        %660 = vmatprep.subr.mxu0 0.0
        %661 = vmatpush1.msra.mxu0 0.0
        %662 = vmatprep.subr.mxu0 0.0
        %663 = vmatpush1.msra.mxu0 0.0
        %664 = vmatprep.subr.mxu0 0.0
        %665 = vmatpush1.msra.mxu0 0.0
        %666 = vmatprep.subr.mxu0 0.0
        %667 = vmatpush1.msra.mxu0 0.0
        %668 = vmatprep.subr.mxu0 0.0
        %669 = vmatpush1.msra.mxu0 0.0
        %670 = vmatprep.subr.mxu0 0.0
        %671 = vmatpush1.msra.mxu0 0.0
        %672 = vmatprep.subr.mxu0 0.0
        %673 = vmatpush1.msra.mxu0 0.0
        %674 = vmatprep.mubr.f32.mxu0 0.0
        %675 = vmatmul.mubr.f32.gmra.mrb[0].mxu0 %v404
        %v676 = vpop.f32.mrb[0].mxu0
        %v677 = vadd.f32 %v349, %v676
        %v678 = vpop.f32.mrb[0].mxu0
        %v679 = vadd.f32 %v349, %v678
        %680 = vmatprep.mubr.f32.mxu0 0.0
        %681 = vmatmul.mubr.f32.gmra.mrb[0].mxu0 %v407
        %v682 = vpop.f32.mrb[0].mxu0
        %v683 = vadd.f32 %v354, %v682
        %v684 = vpop.f32.mrb[0].mxu0
        %v685 = vadd.f32 %v354, %v684
        %686 = vmatprep.mubr.f32.mxu0 0.0
        %687 = vmatmul.mubr.f32.gmra.mrb[0].mxu0 %v410
        %v688 = vpop.f32.mrb[0].mxu0
        %v689 = vadd.f32 %v359, %v688
        %v690 = vpop.f32.mrb[0].mxu0
        %v691 = vadd.f32 %v359, %v690
        %692 = vmatprep.mubr.f32.mxu0 0.0
        %693 = vmatmul.mubr.f32.gmra.mrb[0].mxu0 %v413
        %v694 = vpop.f32.mrb[0].mxu0
        %v695 = vadd.f32 %v364, %v694
        %v696 = vpop.f32.mrb[0].mxu0
        %v697 = vadd.f32 %v364, %v696
        %698 = vdwg.mxu0
        %699 = vmatprep.subr.mxu0 %v430
        %700 = vmatpush1.msra.mxu0 %v428
        %701 = vmatprep.subr.mxu0 0.0
        %702 = vmatpush1.msra.mxu0 0.0
        %703 = vmatprep.subr.mxu0 0.0
        %704 = vmatpush1.msra.mxu0 0.0
        %705 = vmatprep.subr.mxu0 0.0
        %706 = vmatpush1.msra.mxu0 0.0
        %707 = vmatprep.subr.mxu0 0.0
        %708 = vmatpush1.msra.mxu0 0.0
        %709 = vmatprep.subr.mxu0 0.0
        %710 = vmatpush1.msra.mxu0 0.0
        %711 = vmatprep.subr.mxu0 0.0
        %712 = vmatpush1.msra.mxu0 0.0
        %713 = vmatprep.subr.mxu0 0.0
        %714 = vmatpush1.msra.mxu0 0.0
        %715 = vmatprep.subr.mxu0 0.0
        %716 = vmatpush1.msra.mxu0 0.0
        %717 = vmatprep.subr.mxu0 0.0
        %718 = vmatpush1.msra.mxu0 0.0
        %719 = vmatprep.subr.mxu0 0.0
        %720 = vmatpush1.msra.mxu0 0.0
        %721 = vmatprep.subr.mxu0 0.0
        %722 = vmatpush1.msra.mxu0 0.0
        %723 = vmatprep.subr.mxu0 0.0
        %724 = vmatpush1.msra.mxu0 0.0
        %725 = vmatprep.subr.mxu0 0.0
        %726 = vmatpush1.msra.mxu0 0.0
        %727 = vmatprep.subr.mxu0 0.0
        %728 = vmatpush1.msra.mxu0 0.0
        %729 = vmatprep.subr.mxu0 0.0
        %730 = vmatpush1.msra.mxu0 0.0
        %731 = vmatprep.subr.mxu0 0.0
        %732 = vmatpush1.msra.mxu0 0.0
        %733 = vmatprep.subr.mxu0 0.0
        %734 = vmatpush1.msra.mxu0 0.0
        %735 = vmatprep.subr.mxu0 0.0
        %736 = vmatpush1.msra.mxu0 0.0
        %737 = vmatprep.subr.mxu0 0.0
        %738 = vmatpush1.msra.mxu0 0.0
        %739 = vmatprep.subr.mxu0 0.0
        %740 = vmatpush1.msra.mxu0 0.0
        %741 = vmatprep.subr.mxu0 0.0
        %742 = vmatpush1.msra.mxu0 0.0
        %743 = vmatprep.subr.mxu0 0.0
        %744 = vmatpush1.msra.mxu0 0.0
        %745 = vmatprep.subr.mxu0 0.0
        %746 = vmatpush1.msra.mxu0 0.0
        %747 = vmatprep.subr.mxu0 0.0
        %748 = vmatpush1.msra.mxu0 0.0
        %749 = vmatprep.subr.mxu0 0.0
        %750 = vmatpush1.msra.mxu0 0.0
        %751 = vmatprep.subr.mxu0 0.0
        %752 = vmatpush1.msra.mxu0 0.0
        %753 = vmatprep.subr.mxu0 0.0
        %754 = vmatpush1.msra.mxu0 0.0
        %755 = vmatprep.subr.mxu0 0.0
        %756 = vmatpush1.msra.mxu0 0.0
        %757 = vmatprep.subr.mxu0 0.0
        %758 = vmatpush1.msra.mxu0 0.0
        %759 = vmatprep.subr.mxu0 0.0
        %760 = vmatpush1.msra.mxu0 0.0
        %761 = vmatprep.subr.mxu0 0.0
        %762 = vmatpush1.msra.mxu0 0.0
        %763 = vmatprep.mubr.f32.mxu0 0.0
        %764 = vmatmul.mubr.f32.gmra.mrb[0].mxu0 %v404
        %v765 = vpop.f32.mrb[0].mxu0
        %v766 = vadd.f32 %v349, %v765
        %v767 = vpop.f32.mrb[0].mxu0
        %v768 = vadd.f32 %v349, %v767
        %769 = vmatprep.mubr.f32.mxu0 0.0
        %770 = vmatmul.mubr.f32.gmra.mrb[0].mxu0 %v407
        %v771 = vpop.f32.mrb[0].mxu0
        %v772 = vadd.f32 %v354, %v771
        %v773 = vpop.f32.mrb[0].mxu0
        %v774 = vadd.f32 %v354, %v773
        %775 = vmatprep.mubr.f32.mxu0 0.0
        %776 = vmatmul.mubr.f32.gmra.mrb[0].mxu0 %v410
        %v777 = vpop.f32.mrb[0].mxu0
        %v778 = vadd.f32 %v359, %v777
        %v779 = vpop.f32.mrb[0].mxu0
        %v780 = vadd.f32 %v359, %v779
        %781 = vmatprep.mubr.f32.mxu0 0.0
        %782 = vmatmul.mubr.f32.gmra.mrb[0].mxu0 %v413
        %v783 = vpop.f32.mrb[0].mxu0
        %v784 = vadd.f32 %v364, %v783
        %v785 = vpop.f32.mrb[0].mxu0
        %v786 = vadd.f32 %v364, %v785
        %787 = vdwg.mxu0
        %v788 = vtanh.pop %v499
        %v789 = vtanh.pop %v501
        %v790 = vtanh.pop %v588
        %v791 = vtanh.pop %v590
        %v792 = vtanh.pop %v677
        %v793 = vtanh.pop %v679
        %v794 = vtanh.pop %v766
        %v795 = vtanh.pop %v768
        %v796 = vtanh.pop %v505
        %v797 = vtanh.pop %v507
        %v798 = vtanh.pop %v594
        %v799 = vtanh.pop %v596
        %v800 = vtanh.pop %v683
        %v801 = vtanh.pop %v685
        %v802 = vtanh.pop %v772
        %v803 = vtanh.pop %v774
        %v804 = vtanh.pop %v511
        %v805 = vtanh.pop %v513
        %v806 = vtanh.pop %v600
        %v807 = vtanh.pop %v602
        %v808 = vtanh.pop %v689
        %v809 = vtanh.pop %v691
        %v810 = vtanh.pop %v778
        %v811 = vtanh.pop %v780
        %v812 = vtanh.pop %v517
        %v813 = vtanh.pop %v519
        %v814 = vtanh.pop %v606
        %v815 = vtanh.pop %v608
        %v816 = vtanh.pop %v695
        %v817 = vtanh.pop %v697
        %v818 = vtanh.pop %v784
        %v819 = vtanh.pop %v786
        %v820 = vld [vmem:[%s3] sm:$0xff]
        %v821 = vld [vmem:[%s3 + $0x8] sm:$0xff]
        %v822 = vld [vmem:[%s3 + $0x10] sm:$0xff]
        %v823 = vld [vmem:[%s3 + $0x18] sm:$0xff]
        %v824 = vld [vmem:[%s4] sm:$0xff]
        %v825 = vld [vmem:[%s4 + $0x8] sm:$0xff]
        %v826 = vld [vmem:[%s4 + $0x10] sm:$0xff]
        %v827 = vld [vmem:[%s4 + $0x18] sm:$0xff]
        %829 = vset.pattern.permute.xlu0 0
        %830 = vperm.xlu0 %829, %v824
        %v831 = vpop.permute.xlu0 %830
        %834 = vset.pattern.permute.xlu0 0
        %835 = vperm.xlu0 %834, %v825
        %v836 = vpop.permute.xlu0 %835
        %839 = vset.pattern.permute.xlu0 0
        %840 = vperm.xlu0 %839, %v826
        %v841 = vpop.permute.xlu0 %840
        %844 = vset.pattern.permute.xlu0 0
        %845 = vperm.xlu0 %844, %v827
        %v846 = vpop.permute.xlu0 %845
        %vm848 = vcmask 261120
        %v850 = vsel %vm848, %v820, 0
        %v853 = vsel %vm848, %v821, 0
        %v856 = vsel %vm848, %v822, 0
        %v859 = vsel %vm848, %v823, 0
        %861 = vmatprep.subr.mxu0 %v789
        %862 = vmatpush1.msra.mxu0 %v788
        %863 = vmatprep.subr.mxu0 %v797
        %864 = vmatpush1.msra.mxu0 %v796
        %865 = vmatprep.subr.mxu0 %v805
        %866 = vmatpush1.msra.mxu0 %v804
        %867 = vmatprep.subr.mxu0 %v813
        %868 = vmatpush1.msra.mxu0 %v812
        %869 = vmatprep.subr.mxu0 0.0
        %870 = vmatpush1.msra.mxu0 0.0
        %871 = vmatprep.subr.mxu0 0.0
        %872 = vmatpush1.msra.mxu0 0.0
        %873 = vmatprep.subr.mxu0 0.0
        %874 = vmatpush1.msra.mxu0 0.0
        %875 = vmatprep.subr.mxu0 0.0
        %876 = vmatpush1.msra.mxu0 0.0
        %877 = vmatprep.subr.mxu0 0.0
        %878 = vmatpush1.msra.mxu0 0.0
        %879 = vmatprep.subr.mxu0 0.0
        %880 = vmatpush1.msra.mxu0 0.0
        %881 = vmatprep.subr.mxu0 0.0
        %882 = vmatpush1.msra.mxu0 0.0
        %883 = vmatprep.subr.mxu0 0.0
        %884 = vmatpush1.msra.mxu0 0.0
        %885 = vmatprep.subr.mxu0 0.0
        %886 = vmatpush1.msra.mxu0 0.0
        %887 = vmatprep.subr.mxu0 0.0
        %888 = vmatpush1.msra.mxu0 0.0
        %889 = vmatprep.subr.mxu0 0.0
        %890 = vmatpush1.msra.mxu0 0.0
        %891 = vmatprep.subr.mxu0 0.0
        %892 = vmatpush1.msra.mxu0 0.0
        %893 = vmatprep.subr.mxu0 0.0
        %894 = vmatpush1.msra.mxu0 0.0
        %895 = vmatprep.subr.mxu0 0.0
        %896 = vmatpush1.msra.mxu0 0.0
        %897 = vmatprep.subr.mxu0 0.0
        %898 = vmatpush1.msra.mxu0 0.0
        %899 = vmatprep.subr.mxu0 0.0
        %900 = vmatpush1.msra.mxu0 0.0
        %901 = vmatprep.subr.mxu0 0.0
        %902 = vmatpush1.msra.mxu0 0.0
        %903 = vmatprep.subr.mxu0 0.0
        %904 = vmatpush1.msra.mxu0 0.0
        %905 = vmatprep.subr.mxu0 0.0
        %906 = vmatpush1.msra.mxu0 0.0
        %907 = vmatprep.subr.mxu0 0.0
        %908 = vmatpush1.msra.mxu0 0.0
        %909 = vmatprep.subr.mxu0 0.0
        %910 = vmatpush1.msra.mxu0 0.0
        %911 = vmatprep.subr.mxu0 0.0
        %912 = vmatpush1.msra.mxu0 0.0
        %913 = vmatprep.subr.mxu0 0.0
        %914 = vmatpush1.msra.mxu0 0.0
        %915 = vmatprep.subr.mxu0 0.0
        %916 = vmatpush1.msra.mxu0 0.0
        %917 = vmatprep.subr.mxu0 0.0
        %918 = vmatpush1.msra.mxu0 0.0
        %919 = vmatprep.subr.mxu0 0.0
        %920 = vmatpush1.msra.mxu0 0.0
        %921 = vmatprep.subr.mxu0 0.0
        %922 = vmatpush1.msra.mxu0 0.0
        %923 = vmatprep.subr.mxu0 0.0
        %924 = vmatpush1.msra.mxu0 0.0
        %925 = vmatprep.mubr.f32.mxu0 0.0
        %926 = vmatmul.mubr.f32.gmra.mrb[0].mxu0 %v850
        %v927 = vpop.f32.mrb[0].mxu0
        %v928 = vadd.f32 %v831, %v927
        %v929 = vpop.f32.mrb[0].mxu0
        %v930 = vadd.f32 %v831, %v929
        %931 = vmatprep.mubr.f32.mxu0 0.0
        %932 = vmatmul.mubr.f32.gmra.mrb[0].mxu0 %v853
        %v933 = vpop.f32.mrb[0].mxu0
        %v934 = vadd.f32 %v836, %v933
        %v935 = vpop.f32.mrb[0].mxu0
        %v936 = vadd.f32 %v836, %v935
        %937 = vmatprep.mubr.f32.mxu0 0.0
        %938 = vmatmul.mubr.f32.gmra.mrb[0].mxu0 %v856
        %v939 = vpop.f32.mrb[0].mxu0
        %v940 = vadd.f32 %v841, %v939
        %v941 = vpop.f32.mrb[0].mxu0
        %v942 = vadd.f32 %v841, %v941
        %943 = vmatprep.mubr.f32.mxu0 0.0
        %944 = vmatmul.mubr.f32.gmra.mrb[0].mxu0 %v859
        %v945 = vpop.f32.mrb[0].mxu0
        %v946 = vadd.f32 %v846, %v945
        %v947 = vpop.f32.mrb[0].mxu0
        %v948 = vadd.f32 %v846, %v947
        %949 = vdwg.mxu0
        %950 = vmatprep.subr.mxu0 %v791
        %951 = vmatpush1.msra.mxu0 %v790
        %952 = vmatprep.subr.mxu0 %v799
        %953 = vmatpush1.msra.mxu0 %v798
        %954 = vmatprep.subr.mxu0 %v807
        %955 = vmatpush1.msra.mxu0 %v806
        %956 = vmatprep.subr.mxu0 %v815
        %957 = vmatpush1.msra.mxu0 %v814
        %958 = vmatprep.subr.mxu0 0.0
        %959 = vmatpush1.msra.mxu0 0.0
        %960 = vmatprep.subr.mxu0 0.0
        %961 = vmatpush1.msra.mxu0 0.0
        %962 = vmatprep.subr.mxu0 0.0
        %963 = vmatpush1.msra.mxu0 0.0
        %964 = vmatprep.subr.mxu0 0.0
        %965 = vmatpush1.msra.mxu0 0.0
        %966 = vmatprep.subr.mxu0 0.0
        %967 = vmatpush1.msra.mxu0 0.0
        %968 = vmatprep.subr.mxu0 0.0
        %969 = vmatpush1.msra.mxu0 0.0
        %970 = vmatprep.subr.mxu0 0.0
        %971 = vmatpush1.msra.mxu0 0.0
        %972 = vmatprep.subr.mxu0 0.0
        %973 = vmatpush1.msra.mxu0 0.0
        %974 = vmatprep.subr.mxu0 0.0
        %975 = vmatpush1.msra.mxu0 0.0
        %976 = vmatprep.subr.mxu0 0.0
        %977 = vmatpush1.msra.mxu0 0.0
        %978 = vmatprep.subr.mxu0 0.0
        %979 = vmatpush1.msra.mxu0 0.0
        %980 = vmatprep.subr.mxu0 0.0
        %981 = vmatpush1.msra.mxu0 0.0
        %982 = vmatprep.subr.mxu0 0.0
        %983 = vmatpush1.msra.mxu0 0.0
        %984 = vmatprep.subr.mxu0 0.0
        %985 = vmatpush1.msra.mxu0 0.0
        %986 = vmatprep.subr.mxu0 0.0
        %987 = vmatpush1.msra.mxu0 0.0
        %988 = vmatprep.subr.mxu0 0.0
        %989 = vmatpush1.msra.mxu0 0.0
        %990 = vmatprep.subr.mxu0 0.0
        %991 = vmatpush1.msra.mxu0 0.0
        %992 = vmatprep.subr.mxu0 0.0
        %993 = vmatpush1.msra.mxu0 0.0
        %994 = vmatprep.subr.mxu0 0.0
        %995 = vmatpush1.msra.mxu0 0.0
        %996 = vmatprep.subr.mxu0 0.0
        %997 = vmatpush1.msra.mxu0 0.0
        %998 = vmatprep.subr.mxu0 0.0
        %999 = vmatpush1.msra.mxu0 0.0
        %1000 = vmatprep.subr.mxu0 0.0
        %1001 = vmatpush1.msra.mxu0 0.0
        %1002 = vmatprep.subr.mxu0 0.0
        %1003 = vmatpush1.msra.mxu0 0.0
        %1004 = vmatprep.subr.mxu0 0.0
        %1005 = vmatpush1.msra.mxu0 0.0
        %1006 = vmatprep.subr.mxu0 0.0
        %1007 = vmatpush1.msra.mxu0 0.0
        %1008 = vmatprep.subr.mxu0 0.0
        %1009 = vmatpush1.msra.mxu0 0.0
        %1010 = vmatprep.subr.mxu0 0.0
        %1011 = vmatpush1.msra.mxu0 0.0
        %1012 = vmatprep.subr.mxu0 0.0
        %1013 = vmatpush1.msra.mxu0 0.0
        %1014 = vmatprep.mubr.f32.mxu0 0.0
        %1015 = vmatmul.mubr.f32.gmra.mrb[0].mxu0 %v850
        %v1016 = vpop.f32.mrb[0].mxu0
        %v1017 = vadd.f32 %v831, %v1016
        %v1018 = vpop.f32.mrb[0].mxu0
        %v1019 = vadd.f32 %v831, %v1018
        %1020 = vmatprep.mubr.f32.mxu0 0.0
        %1021 = vmatmul.mubr.f32.gmra.mrb[0].mxu0 %v853
        %v1022 = vpop.f32.mrb[0].mxu0
        %v1023 = vadd.f32 %v836, %v1022
        %v1024 = vpop.f32.mrb[0].mxu0
        %v1025 = vadd.f32 %v836, %v1024
        %1026 = vmatprep.mubr.f32.mxu0 0.0
        %1027 = vmatmul.mubr.f32.gmra.mrb[0].mxu0 %v856
        %v1028 = vpop.f32.mrb[0].mxu0
        %v1029 = vadd.f32 %v841, %v1028
        %v1030 = vpop.f32.mrb[0].mxu0
        %v1031 = vadd.f32 %v841, %v1030
        %1032 = vmatprep.mubr.f32.mxu0 0.0
        %1033 = vmatmul.mubr.f32.gmra.mrb[0].mxu0 %v859
        %v1034 = vpop.f32.mrb[0].mxu0
        %v1035 = vadd.f32 %v846, %v1034
        %v1036 = vpop.f32.mrb[0].mxu0
        %v1037 = vadd.f32 %v846, %v1036
        %1038 = vdwg.mxu0
        %1039 = vmatprep.subr.mxu0 %v793
        %1040 = vmatpush1.msra.mxu0 %v792
        %1041 = vmatprep.subr.mxu0 %v801
        %1042 = vmatpush1.msra.mxu0 %v800
        %1043 = vmatprep.subr.mxu0 %v809
        %1044 = vmatpush1.msra.mxu0 %v808
        %1045 = vmatprep.subr.mxu0 %v817
        %1046 = vmatpush1.msra.mxu0 %v816
        %1047 = vmatprep.subr.mxu0 0.0
        %1048 = vmatpush1.msra.mxu0 0.0
        %1049 = vmatprep.subr.mxu0 0.0
        %1050 = vmatpush1.msra.mxu0 0.0
        %1051 = vmatprep.subr.mxu0 0.0
        %1052 = vmatpush1.msra.mxu0 0.0
        %1053 = vmatprep.subr.mxu0 0.0
        %1054 = vmatpush1.msra.mxu0 0.0
        %1055 = vmatprep.subr.mxu0 0.0
        %1056 = vmatpush1.msra.mxu0 0.0
        %1057 = vmatprep.subr.mxu0 0.0
        %1058 = vmatpush1.msra.mxu0 0.0
        %1059 = vmatprep.subr.mxu0 0.0
        %1060 = vmatpush1.msra.mxu0 0.0
        %1061 = vmatprep.subr.mxu0 0.0
        %1062 = vmatpush1.msra.mxu0 0.0
        %1063 = vmatprep.subr.mxu0 0.0
        %1064 = vmatpush1.msra.mxu0 0.0
        %1065 = vmatprep.subr.mxu0 0.0
        %1066 = vmatpush1.msra.mxu0 0.0
        %1067 = vmatprep.subr.mxu0 0.0
        %1068 = vmatpush1.msra.mxu0 0.0
        %1069 = vmatprep.subr.mxu0 0.0
        %1070 = vmatpush1.msra.mxu0 0.0
        %1071 = vmatprep.subr.mxu0 0.0
        %1072 = vmatpush1.msra.mxu0 0.0
        %1073 = vmatprep.subr.mxu0 0.0
        %1074 = vmatpush1.msra.mxu0 0.0
        %1075 = vmatprep.subr.mxu0 0.0
        %1076 = vmatpush1.msra.mxu0 0.0
        %1077 = vmatprep.subr.mxu0 0.0
        %1078 = vmatpush1.msra.mxu0 0.0
        %1079 = vmatprep.subr.mxu0 0.0
        %1080 = vmatpush1.msra.mxu0 0.0
        %1081 = vmatprep.subr.mxu0 0.0
        %1082 = vmatpush1.msra.mxu0 0.0
        %1083 = vmatprep.subr.mxu0 0.0
        %1084 = vmatpush1.msra.mxu0 0.0
        %1085 = vmatprep.subr.mxu0 0.0
        %1086 = vmatpush1.msra.mxu0 0.0
        %1087 = vmatprep.subr.mxu0 0.0
        %1088 = vmatpush1.msra.mxu0 0.0
        %1089 = vmatprep.subr.mxu0 0.0
        %1090 = vmatpush1.msra.mxu0 0.0
        %1091 = vmatprep.subr.mxu0 0.0
        %1092 = vmatpush1.msra.mxu0 0.0
        %1093 = vmatprep.subr.mxu0 0.0
        %1094 = vmatpush1.msra.mxu0 0.0
        %1095 = vmatprep.subr.mxu0 0.0
        %1096 = vmatpush1.msra.mxu0 0.0
        %1097 = vmatprep.subr.mxu0 0.0
        %1098 = vmatpush1.msra.mxu0 0.0
        %1099 = vmatprep.subr.mxu0 0.0
        %1100 = vmatpush1.msra.mxu0 0.0
        %1101 = vmatprep.subr.mxu0 0.0
        %1102 = vmatpush1.msra.mxu0 0.0
        %1103 = vmatprep.mubr.f32.mxu0 0.0
        %1104 = vmatmul.mubr.f32.gmra.mrb[0].mxu0 %v850
        %v1105 = vpop.f32.mrb[0].mxu0
        %v1106 = vadd.f32 %v831, %v1105
        %v1107 = vpop.f32.mrb[0].mxu0
        %v1108 = vadd.f32 %v831, %v1107
        %1109 = vmatprep.mubr.f32.mxu0 0.0
        %1110 = vmatmul.mubr.f32.gmra.mrb[0].mxu0 %v853
        %v1111 = vpop.f32.mrb[0].mxu0
        %v1112 = vadd.f32 %v836, %v1111
        %v1113 = vpop.f32.mrb[0].mxu0
        %v1114 = vadd.f32 %v836, %v1113
        %1115 = vmatprep.mubr.f32.mxu0 0.0
        %1116 = vmatmul.mubr.f32.gmra.mrb[0].mxu0 %v856
        %v1117 = vpop.f32.mrb[0].mxu0
        %v1118 = vadd.f32 %v841, %v1117
        %v1119 = vpop.f32.mrb[0].mxu0
        %v1120 = vadd.f32 %v841, %v1119
        %1121 = vmatprep.mubr.f32.mxu0 0.0
        %1122 = vmatmul.mubr.f32.gmra.mrb[0].mxu0 %v859
        %v1123 = vpop.f32.mrb[0].mxu0
        %v1124 = vadd.f32 %v846, %v1123
        %v1125 = vpop.f32.mrb[0].mxu0
        %v1126 = vadd.f32 %v846, %v1125
        %1127 = vdwg.mxu0
        %1128 = vmatprep.subr.mxu0 %v795
        %1129 = vmatpush1.msra.mxu0 %v794
        %1130 = vmatprep.subr.mxu0 %v803
        %1131 = vmatpush1.msra.mxu0 %v802
        %1132 = vmatprep.subr.mxu0 %v811
        %1133 = vmatpush1.msra.mxu0 %v810
        %1134 = vmatprep.subr.mxu0 %v819
        %1135 = vmatpush1.msra.mxu0 %v818
        %1136 = vmatprep.subr.mxu0 0.0
        %1137 = vmatpush1.msra.mxu0 0.0
        %1138 = vmatprep.subr.mxu0 0.0
        %1139 = vmatpush1.msra.mxu0 0.0
        %1140 = vmatprep.subr.mxu0 0.0
        %1141 = vmatpush1.msra.mxu0 0.0
        %1142 = vmatprep.subr.mxu0 0.0
        %1143 = vmatpush1.msra.mxu0 0.0
        %1144 = vmatprep.subr.mxu0 0.0
        %1145 = vmatpush1.msra.mxu0 0.0
        %1146 = vmatprep.subr.mxu0 0.0
        %1147 = vmatpush1.msra.mxu0 0.0
        %1148 = vmatprep.subr.mxu0 0.0
        %1149 = vmatpush1.msra.mxu0 0.0
        %1150 = vmatprep.subr.mxu0 0.0
        %1151 = vmatpush1.msra.mxu0 0.0
        %1152 = vmatprep.subr.mxu0 0.0
        %1153 = vmatpush1.msra.mxu0 0.0
        %1154 = vmatprep.subr.mxu0 0.0
        %1155 = vmatpush1.msra.mxu0 0.0
        %1156 = vmatprep.subr.mxu0 0.0
        %1157 = vmatpush1.msra.mxu0 0.0
        %1158 = vmatprep.subr.mxu0 0.0
        %1159 = vmatpush1.msra.mxu0 0.0
        %1160 = vmatprep.subr.mxu0 0.0
        %1161 = vmatpush1.msra.mxu0 0.0
        %1162 = vmatprep.subr.mxu0 0.0
        %1163 = vmatpush1.msra.mxu0 0.0
        %1164 = vmatprep.subr.mxu0 0.0
        %1165 = vmatpush1.msra.mxu0 0.0
        %1166 = vmatprep.subr.mxu0 0.0
        %1167 = vmatpush1.msra.mxu0 0.0
        %1168 = vmatprep.subr.mxu0 0.0
        %1169 = vmatpush1.msra.mxu0 0.0
        %1170 = vmatprep.subr.mxu0 0.0
        %1171 = vmatpush1.msra.mxu0 0.0
        %1172 = vmatprep.subr.mxu0 0.0
        %1173 = vmatpush1.msra.mxu0 0.0
        %1174 = vmatprep.subr.mxu0 0.0
        %1175 = vmatpush1.msra.mxu0 0.0
        %1176 = vmatprep.subr.mxu0 0.0
        %1177 = vmatpush1.msra.mxu0 0.0
        %1178 = vmatprep.subr.mxu0 0.0
        %1179 = vmatpush1.msra.mxu0 0.0
        %1180 = vmatprep.subr.mxu0 0.0
        %1181 = vmatpush1.msra.mxu0 0.0
        %1182 = vmatprep.subr.mxu0 0.0
        %1183 = vmatpush1.msra.mxu0 0.0
        %1184 = vmatprep.subr.mxu0 0.0
        %1185 = vmatpush1.msra.mxu0 0.0
        %1186 = vmatprep.subr.mxu0 0.0
        %1187 = vmatpush1.msra.mxu0 0.0
        %1188 = vmatprep.subr.mxu0 0.0
        %1189 = vmatpush1.msra.mxu0 0.0
        %1190 = vmatprep.subr.mxu0 0.0
        %1191 = vmatpush1.msra.mxu0 0.0
        %1192 = vmatprep.mubr.f32.mxu0 0.0
        %1193 = vmatmul.mubr.f32.gmra.mrb[0].mxu0 %v850
        %v1194 = vpop.f32.mrb[0].mxu0
        %v1195 = vadd.f32 %v831, %v1194
        %v1196 = vpop.f32.mrb[0].mxu0
        %v1197 = vadd.f32 %v831, %v1196
        %1198 = vmatprep.mubr.f32.mxu0 0.0
        %1199 = vmatmul.mubr.f32.gmra.mrb[0].mxu0 %v853
        %v1200 = vpop.f32.mrb[0].mxu0
        %v1201 = vadd.f32 %v836, %v1200
        %v1202 = vpop.f32.mrb[0].mxu0
        %v1203 = vadd.f32 %v836, %v1202
        %1204 = vmatprep.mubr.f32.mxu0 0.0
        %1205 = vmatmul.mubr.f32.gmra.mrb[0].mxu0 %v856
        %v1206 = vpop.f32.mrb[0].mxu0
        %v1207 = vadd.f32 %v841, %v1206
        %v1208 = vpop.f32.mrb[0].mxu0
        %v1209 = vadd.f32 %v841, %v1208
        %1210 = vmatprep.mubr.f32.mxu0 0.0
        %1211 = vmatmul.mubr.f32.gmra.mrb[0].mxu0 %v859
        %v1212 = vpop.f32.mrb[0].mxu0
        %v1213 = vadd.f32 %v846, %v1212
        %v1214 = vpop.f32.mrb[0].mxu0
        %v1215 = vadd.f32 %v846, %v1214
        %1216 = vdwg.mxu0
        %v1217 = vtanh.pop %v928
        %v1218 = vtanh.pop %v930
        %v1219 = vtanh.pop %v1017
        %v1220 = vtanh.pop %v1019
        %v1221 = vtanh.pop %v1106
        %v1222 = vtanh.pop %v1108
        %v1223 = vtanh.pop %v1195
        %v1224 = vtanh.pop %v1197
        %v1225 = vtanh.pop %v934
        %v1226 = vtanh.pop %v936
        %v1227 = vtanh.pop %v1023
        %v1228 = vtanh.pop %v1025
        %v1229 = vtanh.pop %v1112
        %v1230 = vtanh.pop %v1114
        %v1231 = vtanh.pop %v1201
        %v1232 = vtanh.pop %v1203
        %v1233 = vtanh.pop %v940
        %v1234 = vtanh.pop %v942
        %v1235 = vtanh.pop %v1029
        %v1236 = vtanh.pop %v1031
        %v1237 = vtanh.pop %v1118
        %v1238 = vtanh.pop %v1120
        %v1239 = vtanh.pop %v1207
        %v1240 = vtanh.pop %v1209
        %v1241 = vtanh.pop %v946
        %v1242 = vtanh.pop %v948
        %v1243 = vtanh.pop %v1035
        %v1244 = vtanh.pop %v1037
        %v1245 = vtanh.pop %v1124
        %v1246 = vtanh.pop %v1126
        %v1247 = vtanh.pop %v1213
        %v1248 = vtanh.pop %v1215
        %v1249 = vld [vmem:[%s5] sm:$0xff]
        %v1250 = vld [vmem:[%s5 + $0x8] sm:$0xff]
        %v1251 = vld [vmem:[%s5 + $0x10] sm:$0xff]
        %v1252 = vld [vmem:[%s5 + $0x18] sm:$0xff]
        %v1253 = vld [vmem:[%s6] sm:$0xff]
        %v1254 = vld [vmem:[%s6 + $0x8] sm:$0xff]
        %v1255 = vld [vmem:[%s6 + $0x10] sm:$0xff]
        %v1256 = vld [vmem:[%s6 + $0x18] sm:$0xff]
        %1258 = vset.pattern.permute.xlu0 0
        %1259 = vperm.xlu0 %1258, %v1253
        %v1260 = vpop.permute.xlu0 %1259
        %1263 = vset.pattern.permute.xlu0 0
        %1264 = vperm.xlu0 %1263, %v1254
        %v1265 = vpop.permute.xlu0 %1264
        %1268 = vset.pattern.permute.xlu0 0
        %1269 = vperm.xlu0 %1268, %v1255
        %v1270 = vpop.permute.xlu0 %1269
        %1273 = vset.pattern.permute.xlu0 0
        %1274 = vperm.xlu0 %1273, %v1256
        %v1275 = vpop.permute.xlu0 %1274
        %v1278 = vsel %vm848, %v1249, 0
        %v1281 = vsel %vm848, %v1250, 0
        %v1284 = vsel %vm848, %v1251, 0
        %v1287 = vsel %vm848, %v1252, 0
        %1289 = vmatprep.subr.mxu0 %v1218
        %1290 = vmatpush1.msra.mxu0 %v1217
        %1291 = vmatprep.subr.mxu0 %v1226
        %1292 = vmatpush1.msra.mxu0 %v1225
        %1293 = vmatprep.subr.mxu0 %v1234
        %1294 = vmatpush1.msra.mxu0 %v1233
        %1295 = vmatprep.subr.mxu0 %v1242
        %1296 = vmatpush1.msra.mxu0 %v1241
        %1297 = vmatprep.subr.mxu0 0.0
        %1298 = vmatpush1.msra.mxu0 0.0
        %1299 = vmatprep.subr.mxu0 0.0
        %1300 = vmatpush1.msra.mxu0 0.0
        %1301 = vmatprep.subr.mxu0 0.0
        %1302 = vmatpush1.msra.mxu0 0.0
        %1303 = vmatprep.subr.mxu0 0.0
        %1304 = vmatpush1.msra.mxu0 0.0
        %1305 = vmatprep.subr.mxu0 0.0
        %1306 = vmatpush1.msra.mxu0 0.0
        %1307 = vmatprep.subr.mxu0 0.0
        %1308 = vmatpush1.msra.mxu0 0.0
        %1309 = vmatprep.subr.mxu0 0.0
        %1310 = vmatpush1.msra.mxu0 0.0
        %1311 = vmatprep.subr.mxu0 0.0
        %1312 = vmatpush1.msra.mxu0 0.0
        %1313 = vmatprep.subr.mxu0 0.0
        %1314 = vmatpush1.msra.mxu0 0.0
        %1315 = vmatprep.subr.mxu0 0.0
        %1316 = vmatpush1.msra.mxu0 0.0
        %1317 = vmatprep.subr.mxu0 0.0
        %1318 = vmatpush1.msra.mxu0 0.0
        %1319 = vmatprep.subr.mxu0 0.0
        %1320 = vmatpush1.msra.mxu0 0.0
        %1321 = vmatprep.subr.mxu0 0.0
        %1322 = vmatpush1.msra.mxu0 0.0
        %1323 = vmatprep.subr.mxu0 0.0
        %1324 = vmatpush1.msra.mxu0 0.0
        %1325 = vmatprep.subr.mxu0 0.0
        %1326 = vmatpush1.msra.mxu0 0.0
        %1327 = vmatprep.subr.mxu0 0.0
        %1328 = vmatpush1.msra.mxu0 0.0
        %1329 = vmatprep.subr.mxu0 0.0
        %1330 = vmatpush1.msra.mxu0 0.0
        %1331 = vmatprep.subr.mxu0 0.0
        %1332 = vmatpush1.msra.mxu0 0.0
        %1333 = vmatprep.subr.mxu0 0.0
        %1334 = vmatpush1.msra.mxu0 0.0
        %1335 = vmatprep.subr.mxu0 0.0
        %1336 = vmatpush1.msra.mxu0 0.0
        %1337 = vmatprep.subr.mxu0 0.0
        %1338 = vmatpush1.msra.mxu0 0.0
        %1339 = vmatprep.subr.mxu0 0.0
        %1340 = vmatpush1.msra.mxu0 0.0
        %1341 = vmatprep.subr.mxu0 0.0
        %1342 = vmatpush1.msra.mxu0 0.0
        %1343 = vmatprep.subr.mxu0 0.0
        %1344 = vmatpush1.msra.mxu0 0.0
        %1345 = vmatprep.subr.mxu0 0.0
        %1346 = vmatpush1.msra.mxu0 0.0
        %1347 = vmatprep.subr.mxu0 0.0
        %1348 = vmatpush1.msra.mxu0 0.0
        %1349 = vmatprep.subr.mxu0 0.0
        %1350 = vmatpush1.msra.mxu0 0.0
        %1351 = vmatprep.subr.mxu0 0.0
        %1352 = vmatpush1.msra.mxu0 0.0
        %1353 = vmatprep.mubr.f32.mxu0 0.0
        %1354 = vmatmul.mubr.f32.gmra.mrb[0].mxu0 %v1278
        %v1355 = vpop.f32.mrb[0].mxu0
        %v1356 = vadd.f32 %v1260, %v1355
        %v1357 = vpop.f32.mrb[0].mxu0
        %v1358 = vadd.f32 %v1260, %v1357
        %1359 = vmatprep.mubr.f32.mxu0 0.0
        %1360 = vmatmul.mubr.f32.gmra.mrb[0].mxu0 %v1281
        %v1361 = vpop.f32.mrb[0].mxu0
        %v1362 = vadd.f32 %v1265, %v1361
        %v1363 = vpop.f32.mrb[0].mxu0
        %v1364 = vadd.f32 %v1265, %v1363
        %1365 = vmatprep.mubr.f32.mxu0 0.0
        %1366 = vmatmul.mubr.f32.gmra.mrb[0].mxu0 %v1284
        %v1367 = vpop.f32.mrb[0].mxu0
        %v1368 = vadd.f32 %v1270, %v1367
        %v1369 = vpop.f32.mrb[0].mxu0
        %v1370 = vadd.f32 %v1270, %v1369
        %1371 = vmatprep.mubr.f32.mxu0 0.0
        %1372 = vmatmul.mubr.f32.gmra.mrb[0].mxu0 %v1287
        %v1373 = vpop.f32.mrb[0].mxu0
        %v1374 = vadd.f32 %v1275, %v1373
        %v1375 = vpop.f32.mrb[0].mxu0
        %v1376 = vadd.f32 %v1275, %v1375
        %1377 = vdwg.mxu0
        %1378 = vmatprep.subr.mxu0 %v1220
        %1379 = vmatpush1.msra.mxu0 %v1219
        %1380 = vmatprep.subr.mxu0 %v1228
        %1381 = vmatpush1.msra.mxu0 %v1227
        %1382 = vmatprep.subr.mxu0 %v1236
        %1383 = vmatpush1.msra.mxu0 %v1235
        %1384 = vmatprep.subr.mxu0 %v1244
        %1385 = vmatpush1.msra.mxu0 %v1243
        %1386 = vmatprep.subr.mxu0 0.0
        %1387 = vmatpush1.msra.mxu0 0.0
        %1388 = vmatprep.subr.mxu0 0.0
        %1389 = vmatpush1.msra.mxu0 0.0
        %1390 = vmatprep.subr.mxu0 0.0
        %1391 = vmatpush1.msra.mxu0 0.0
        %1392 = vmatprep.subr.mxu0 0.0
        %1393 = vmatpush1.msra.mxu0 0.0
        %1394 = vmatprep.subr.mxu0 0.0
        %1395 = vmatpush1.msra.mxu0 0.0
        %1396 = vmatprep.subr.mxu0 0.0
        %1397 = vmatpush1.msra.mxu0 0.0
        %1398 = vmatprep.subr.mxu0 0.0
        %1399 = vmatpush1.msra.mxu0 0.0
        %1400 = vmatprep.subr.mxu0 0.0
        %1401 = vmatpush1.msra.mxu0 0.0
        %1402 = vmatprep.subr.mxu0 0.0
        %1403 = vmatpush1.msra.mxu0 0.0
        %1404 = vmatprep.subr.mxu0 0.0
        %1405 = vmatpush1.msra.mxu0 0.0
        %1406 = vmatprep.subr.mxu0 0.0
        %1407 = vmatpush1.msra.mxu0 0.0
        %1408 = vmatprep.subr.mxu0 0.0
        %1409 = vmatpush1.msra.mxu0 0.0
        %1410 = vmatprep.subr.mxu0 0.0
        %1411 = vmatpush1.msra.mxu0 0.0
        %1412 = vmatprep.subr.mxu0 0.0
        %1413 = vmatpush1.msra.mxu0 0.0
        %1414 = vmatprep.subr.mxu0 0.0
        %1415 = vmatpush1.msra.mxu0 0.0
        %1416 = vmatprep.subr.mxu0 0.0
        %1417 = vmatpush1.msra.mxu0 0.0
        %1418 = vmatprep.subr.mxu0 0.0
        %1419 = vmatpush1.msra.mxu0 0.0
        %1420 = vmatprep.subr.mxu0 0.0
        %1421 = vmatpush1.msra.mxu0 0.0
        %1422 = vmatprep.subr.mxu0 0.0
        %1423 = vmatpush1.msra.mxu0 0.0
        %1424 = vmatprep.subr.mxu0 0.0
        %1425 = vmatpush1.msra.mxu0 0.0
        %1426 = vmatprep.subr.mxu0 0.0
        %1427 = vmatpush1.msra.mxu0 0.0
        %1428 = vmatprep.subr.mxu0 0.0
        %1429 = vmatpush1.msra.mxu0 0.0
        %1430 = vmatprep.subr.mxu0 0.0
        %1431 = vmatpush1.msra.mxu0 0.0
        %1432 = vmatprep.subr.mxu0 0.0
        %1433 = vmatpush1.msra.mxu0 0.0
        %1434 = vmatprep.subr.mxu0 0.0
        %1435 = vmatpush1.msra.mxu0 0.0
        %1436 = vmatprep.subr.mxu0 0.0
        %1437 = vmatpush1.msra.mxu0 0.0
        %1438 = vmatprep.subr.mxu0 0.0
        %1439 = vmatpush1.msra.mxu0 0.0
        %1440 = vmatprep.subr.mxu0 0.0
        %1441 = vmatpush1.msra.mxu0 0.0
        %1442 = vmatprep.mubr.f32.mxu0 0.0
        %1443 = vmatmul.mubr.f32.gmra.mrb[0].mxu0 %v1278
        %v1444 = vpop.f32.mrb[0].mxu0
        %v1445 = vadd.f32 %v1260, %v1444
        %v1446 = vpop.f32.mrb[0].mxu0
        %v1447 = vadd.f32 %v1260, %v1446
        %1448 = vmatprep.mubr.f32.mxu0 0.0
        %1449 = vmatmul.mubr.f32.gmra.mrb[0].mxu0 %v1281
        %v1450 = vpop.f32.mrb[0].mxu0
        %v1451 = vadd.f32 %v1265, %v1450
        %v1452 = vpop.f32.mrb[0].mxu0
        %v1453 = vadd.f32 %v1265, %v1452
        %1454 = vmatprep.mubr.f32.mxu0 0.0
        %1455 = vmatmul.mubr.f32.gmra.mrb[0].mxu0 %v1284
        %v1456 = vpop.f32.mrb[0].mxu0
        %v1457 = vadd.f32 %v1270, %v1456
        %v1458 = vpop.f32.mrb[0].mxu0
        %v1459 = vadd.f32 %v1270, %v1458
        %1460 = vmatprep.mubr.f32.mxu0 0.0
        %1461 = vmatmul.mubr.f32.gmra.mrb[0].mxu0 %v1287
        %v1462 = vpop.f32.mrb[0].mxu0
        %v1463 = vadd.f32 %v1275, %v1462
        %v1464 = vpop.f32.mrb[0].mxu0
        %v1465 = vadd.f32 %v1275, %v1464
        %1466 = vdwg.mxu0
        %1467 = vmatprep.subr.mxu0 %v1222
        %1468 = vmatpush1.msra.mxu0 %v1221
        %1469 = vmatprep.subr.mxu0 %v1230
        %1470 = vmatpush1.msra.mxu0 %v1229
        %1471 = vmatprep.subr.mxu0 %v1238
        %1472 = vmatpush1.msra.mxu0 %v1237
        %1473 = vmatprep.subr.mxu0 %v1246
        %1474 = vmatpush1.msra.mxu0 %v1245
        %1475 = vmatprep.subr.mxu0 0.0
        %1476 = vmatpush1.msra.mxu0 0.0
        %1477 = vmatprep.subr.mxu0 0.0
        %1478 = vmatpush1.msra.mxu0 0.0
        %1479 = vmatprep.subr.mxu0 0.0
        %1480 = vmatpush1.msra.mxu0 0.0
        %1481 = vmatprep.subr.mxu0 0.0
        %1482 = vmatpush1.msra.mxu0 0.0
        %1483 = vmatprep.subr.mxu0 0.0
        %1484 = vmatpush1.msra.mxu0 0.0
        %1485 = vmatprep.subr.mxu0 0.0
        %1486 = vmatpush1.msra.mxu0 0.0
        %1487 = vmatprep.subr.mxu0 0.0
        %1488 = vmatpush1.msra.mxu0 0.0
        %1489 = vmatprep.subr.mxu0 0.0
        %1490 = vmatpush1.msra.mxu0 0.0
        %1491 = vmatprep.subr.mxu0 0.0
        %1492 = vmatpush1.msra.mxu0 0.0
        %1493 = vmatprep.subr.mxu0 0.0
        %1494 = vmatpush1.msra.mxu0 0.0
        %1495 = vmatprep.subr.mxu0 0.0
        %1496 = vmatpush1.msra.mxu0 0.0
        %1497 = vmatprep.subr.mxu0 0.0
        %1498 = vmatpush1.msra.mxu0 0.0
        %1499 = vmatprep.subr.mxu0 0.0
        %1500 = vmatpush1.msra.mxu0 0.0
        %1501 = vmatprep.subr.mxu0 0.0
        %1502 = vmatpush1.msra.mxu0 0.0
        %1503 = vmatprep.subr.mxu0 0.0
        %1504 = vmatpush1.msra.mxu0 0.0
        %1505 = vmatprep.subr.mxu0 0.0
        %1506 = vmatpush1.msra.mxu0 0.0
        %1507 = vmatprep.subr.mxu0 0.0
        %1508 = vmatpush1.msra.mxu0 0.0
        %1509 = vmatprep.subr.mxu0 0.0
        %1510 = vmatpush1.msra.mxu0 0.0
        %1511 = vmatprep.subr.mxu0 0.0
        %1512 = vmatpush1.msra.mxu0 0.0
        %1513 = vmatprep.subr.mxu0 0.0
        %1514 = vmatpush1.msra.mxu0 0.0
        %1515 = vmatprep.subr.mxu0 0.0
        %1516 = vmatpush1.msra.mxu0 0.0
        %1517 = vmatprep.subr.mxu0 0.0
        %1518 = vmatpush1.msra.mxu0 0.0
        %1519 = vmatprep.subr.mxu0 0.0
        %1520 = vmatpush1.msra.mxu0 0.0
        %1521 = vmatprep.subr.mxu0 0.0
        %1522 = vmatpush1.msra.mxu0 0.0
        %1523 = vmatprep.subr.mxu0 0.0
        %1524 = vmatpush1.msra.mxu0 0.0
        %1525 = vmatprep.subr.mxu0 0.0
        %1526 = vmatpush1.msra.mxu0 0.0
        %1527 = vmatprep.subr.mxu0 0.0
        %1528 = vmatpush1.msra.mxu0 0.0
        %1529 = vmatprep.subr.mxu0 0.0
        %1530 = vmatpush1.msra.mxu0 0.0
        %1531 = vmatprep.mubr.f32.mxu0 0.0
        %1532 = vmatmul.mubr.f32.gmra.mrb[0].mxu0 %v1278
        %v1533 = vpop.f32.mrb[0].mxu0
        %v1534 = vadd.f32 %v1260, %v1533
        %v1535 = vpop.f32.mrb[0].mxu0
        %v1536 = vadd.f32 %v1260, %v1535
        %1537 = vmatprep.mubr.f32.mxu0 0.0
        %1538 = vmatmul.mubr.f32.gmra.mrb[0].mxu0 %v1281
        %v1539 = vpop.f32.mrb[0].mxu0
        %v1540 = vadd.f32 %v1265, %v1539
        %v1541 = vpop.f32.mrb[0].mxu0
        %v1542 = vadd.f32 %v1265, %v1541
        %1543 = vmatprep.mubr.f32.mxu0 0.0
        %1544 = vmatmul.mubr.f32.gmra.mrb[0].mxu0 %v1284
        %v1545 = vpop.f32.mrb[0].mxu0
        %v1546 = vadd.f32 %v1270, %v1545
        %v1547 = vpop.f32.mrb[0].mxu0
        %v1548 = vadd.f32 %v1270, %v1547
        %1549 = vmatprep.mubr.f32.mxu0 0.0
        %1550 = vmatmul.mubr.f32.gmra.mrb[0].mxu0 %v1287
        %v1551 = vpop.f32.mrb[0].mxu0
        %v1552 = vadd.f32 %v1275, %v1551
        %v1553 = vpop.f32.mrb[0].mxu0
        %v1554 = vadd.f32 %v1275, %v1553
        %1555 = vdwg.mxu0
        %1556 = vmatprep.subr.mxu0 %v1224
        %1557 = vmatpush1.msra.mxu0 %v1223
        %1558 = vmatprep.subr.mxu0 %v1232
        %1559 = vmatpush1.msra.mxu0 %v1231
        %1560 = vmatprep.subr.mxu0 %v1240
        %1561 = vmatpush1.msra.mxu0 %v1239
        %1562 = vmatprep.subr.mxu0 %v1248
        %1563 = vmatpush1.msra.mxu0 %v1247
        %1564 = vmatprep.subr.mxu0 0.0
        %1565 = vmatpush1.msra.mxu0 0.0
        %1566 = vmatprep.subr.mxu0 0.0
        %1567 = vmatpush1.msra.mxu0 0.0
        %1568 = vmatprep.subr.mxu0 0.0
        %1569 = vmatpush1.msra.mxu0 0.0
        %1570 = vmatprep.subr.mxu0 0.0
        %1571 = vmatpush1.msra.mxu0 0.0
        %1572 = vmatprep.subr.mxu0 0.0
        %1573 = vmatpush1.msra.mxu0 0.0
        %1574 = vmatprep.subr.mxu0 0.0
        %1575 = vmatpush1.msra.mxu0 0.0
        %1576 = vmatprep.subr.mxu0 0.0
        %1577 = vmatpush1.msra.mxu0 0.0
        %1578 = vmatprep.subr.mxu0 0.0
        %1579 = vmatpush1.msra.mxu0 0.0
        %1580 = vmatprep.subr.mxu0 0.0
        %1581 = vmatpush1.msra.mxu0 0.0
        %1582 = vmatprep.subr.mxu0 0.0
        %1583 = vmatpush1.msra.mxu0 0.0
        %1584 = vmatprep.subr.mxu0 0.0
        %1585 = vmatpush1.msra.mxu0 0.0
        %1586 = vmatprep.subr.mxu0 0.0
        %1587 = vmatpush1.msra.mxu0 0.0
        %1588 = vmatprep.subr.mxu0 0.0
        %1589 = vmatpush1.msra.mxu0 0.0
        %1590 = vmatprep.subr.mxu0 0.0
        %1591 = vmatpush1.msra.mxu0 0.0
        %1592 = vmatprep.subr.mxu0 0.0
        %1593 = vmatpush1.msra.mxu0 0.0
        %1594 = vmatprep.subr.mxu0 0.0
        %1595 = vmatpush1.msra.mxu0 0.0
        %1596 = vmatprep.subr.mxu0 0.0
        %1597 = vmatpush1.msra.mxu0 0.0
        %1598 = vmatprep.subr.mxu0 0.0
        %1599 = vmatpush1.msra.mxu0 0.0
        %1600 = vmatprep.subr.mxu0 0.0
        %1601 = vmatpush1.msra.mxu0 0.0
        %1602 = vmatprep.subr.mxu0 0.0
        %1603 = vmatpush1.msra.mxu0 0.0
        %1604 = vmatprep.subr.mxu0 0.0
        %1605 = vmatpush1.msra.mxu0 0.0
        %1606 = vmatprep.subr.mxu0 0.0
        %1607 = vmatpush1.msra.mxu0 0.0
        %1608 = vmatprep.subr.mxu0 0.0
        %1609 = vmatpush1.msra.mxu0 0.0
        %1610 = vmatprep.subr.mxu0 0.0
        %1611 = vmatpush1.msra.mxu0 0.0
        %1612 = vmatprep.subr.mxu0 0.0
        %1613 = vmatpush1.msra.mxu0 0.0
        %1614 = vmatprep.subr.mxu0 0.0
        %1615 = vmatpush1.msra.mxu0 0.0
        %1616 = vmatprep.subr.mxu0 0.0
        %1617 = vmatpush1.msra.mxu0 0.0
        %1618 = vmatprep.subr.mxu0 0.0
        %1619 = vmatpush1.msra.mxu0 0.0
        %1620 = vmatprep.mubr.f32.mxu0 0.0
        %1621 = vmatmul.mubr.f32.gmra.mrb[0].mxu0 %v1278
        %v1622 = vpop.f32.mrb[0].mxu0
        %v1623 = vadd.f32 %v1260, %v1622
        %v1624 = vpop.f32.mrb[0].mxu0
        %v1625 = vadd.f32 %v1260, %v1624
        %1626 = vmatprep.mubr.f32.mxu0 0.0
        %1627 = vmatmul.mubr.f32.gmra.mrb[0].mxu0 %v1281
        %v1628 = vpop.f32.mrb[0].mxu0
        %v1629 = vadd.f32 %v1265, %v1628
        %v1630 = vpop.f32.mrb[0].mxu0
        %v1631 = vadd.f32 %v1265, %v1630
        %1632 = vmatprep.mubr.f32.mxu0 0.0
        %1633 = vmatmul.mubr.f32.gmra.mrb[0].mxu0 %v1284
        %v1634 = vpop.f32.mrb[0].mxu0
        %v1635 = vadd.f32 %v1270, %v1634
        %v1636 = vpop.f32.mrb[0].mxu0
        %v1637 = vadd.f32 %v1270, %v1636
        %1638 = vmatprep.mubr.f32.mxu0 0.0
        %1639 = vmatmul.mubr.f32.gmra.mrb[0].mxu0 %v1287
        %v1640 = vpop.f32.mrb[0].mxu0
        %v1641 = vadd.f32 %v1275, %v1640
        %v1642 = vpop.f32.mrb[0].mxu0
        %v1643 = vadd.f32 %v1275, %v1642
        %1644 = vdwg.mxu0
        %v1645 = vtanh.pop %v1356
        %v1646 = vtanh.pop %v1358
        %v1647 = vtanh.pop %v1445
        %v1648 = vtanh.pop %v1447
        %v1649 = vtanh.pop %v1534
        %v1650 = vtanh.pop %v1536
        %v1651 = vtanh.pop %v1623
        %v1652 = vtanh.pop %v1625
        %v1653 = vtanh.pop %v1362
        %v1654 = vtanh.pop %v1364
        %v1655 = vtanh.pop %v1451
        %v1656 = vtanh.pop %v1453
        %v1657 = vtanh.pop %v1540
        %v1658 = vtanh.pop %v1542
        %v1659 = vtanh.pop %v1629
        %v1660 = vtanh.pop %v1631
        %v1661 = vtanh.pop %v1368
        %v1662 = vtanh.pop %v1370
        %v1663 = vtanh.pop %v1457
        %v1664 = vtanh.pop %v1459
        %v1665 = vtanh.pop %v1546
        %v1666 = vtanh.pop %v1548
        %v1667 = vtanh.pop %v1635
        %v1668 = vtanh.pop %v1637
        %v1669 = vtanh.pop %v1374
        %v1670 = vtanh.pop %v1376
        %v1671 = vtanh.pop %v1463
        %v1672 = vtanh.pop %v1465
        %v1673 = vtanh.pop %v1552
        %v1674 = vtanh.pop %v1554
        %v1675 = vtanh.pop %v1641
        %v1676 = vtanh.pop %v1643
        %v1677 = vld [vmem:[%s7] sm:$0x1]
        %v1678 = vld [vmem:[#allocation2] sm:$0x1]
        %1680 = vset.pattern.permute.xlu0 0
        %1681 = vperm.xlu0 %1680, %v1678
        %v1682 = vpop.permute.xlu0 %1681
        %v1684 = vlaneseq
        %v1685 = vshrl.u32 %v1684, 7
        %v1686 = vsub.s32 0, %v1685
        %v1687 = vrot.slane %v1682, %v1686
        %v1689 = vsel %vm848, %v1677, 0
        %1691 = vmatprep.subr.mxu0 %v1646
        %1692 = vmatpush1.msra.mxu0 %v1645
        %1693 = vmatprep.subr.mxu0 %v1654
        %1694 = vmatpush1.msra.mxu0 %v1653
        %1695 = vmatprep.subr.mxu0 %v1662
        %1696 = vmatpush1.msra.mxu0 %v1661
        %1697 = vmatprep.subr.mxu0 %v1670
        %1698 = vmatpush1.msra.mxu0 %v1669
        %1699 = vmatprep.subr.mxu0 0.0
        %1700 = vmatpush1.msra.mxu0 0.0
        %1701 = vmatprep.subr.mxu0 0.0
        %1702 = vmatpush1.msra.mxu0 0.0
        %1703 = vmatprep.subr.mxu0 0.0
        %1704 = vmatpush1.msra.mxu0 0.0
        %1705 = vmatprep.subr.mxu0 0.0
        %1706 = vmatpush1.msra.mxu0 0.0
        %1707 = vmatprep.subr.mxu0 0.0
        %1708 = vmatpush1.msra.mxu0 0.0
        %1709 = vmatprep.subr.mxu0 0.0
        %1710 = vmatpush1.msra.mxu0 0.0
        %1711 = vmatprep.subr.mxu0 0.0
        %1712 = vmatpush1.msra.mxu0 0.0
        %1713 = vmatprep.subr.mxu0 0.0
        %1714 = vmatpush1.msra.mxu0 0.0
        %1715 = vmatprep.subr.mxu0 0.0
        %1716 = vmatpush1.msra.mxu0 0.0
        %1717 = vmatprep.subr.mxu0 0.0
        %1718 = vmatpush1.msra.mxu0 0.0
        %1719 = vmatprep.subr.mxu0 0.0
        %1720 = vmatpush1.msra.mxu0 0.0
        %1721 = vmatprep.subr.mxu0 0.0
        %1722 = vmatpush1.msra.mxu0 0.0
        %1723 = vmatprep.subr.mxu0 0.0
        %1724 = vmatpush1.msra.mxu0 0.0
        %1725 = vmatprep.subr.mxu0 0.0
        %1726 = vmatpush1.msra.mxu0 0.0
        %1727 = vmatprep.subr.mxu0 0.0
        %1728 = vmatpush1.msra.mxu0 0.0
        %1729 = vmatprep.subr.mxu0 0.0
        %1730 = vmatpush1.msra.mxu0 0.0
        %1731 = vmatprep.subr.mxu0 0.0
        %1732 = vmatpush1.msra.mxu0 0.0
        %1733 = vmatprep.subr.mxu0 0.0
        %1734 = vmatpush1.msra.mxu0 0.0
        %1735 = vmatprep.subr.mxu0 0.0
        %1736 = vmatpush1.msra.mxu0 0.0
        %1737 = vmatprep.subr.mxu0 0.0
        %1738 = vmatpush1.msra.mxu0 0.0
        %1739 = vmatprep.subr.mxu0 0.0
        %1740 = vmatpush1.msra.mxu0 0.0
        %1741 = vmatprep.subr.mxu0 0.0
        %1742 = vmatpush1.msra.mxu0 0.0
        %1743 = vmatprep.subr.mxu0 0.0
        %1744 = vmatpush1.msra.mxu0 0.0
        %1745 = vmatprep.subr.mxu0 0.0
        %1746 = vmatpush1.msra.mxu0 0.0
        %1747 = vmatprep.subr.mxu0 0.0
        %1748 = vmatpush1.msra.mxu0 0.0
        %1749 = vmatprep.subr.mxu0 0.0
        %1750 = vmatpush1.msra.mxu0 0.0
        %1751 = vmatprep.subr.mxu0 0.0
        %1752 = vmatpush1.msra.mxu0 0.0
        %1753 = vmatprep.subr.mxu0 0.0
        %1754 = vmatpush1.msra.mxu0 0.0
        %1755 = vmatprep.mubr.f32.mxu0 0.0
        %1756 = vmatmul.mubr.f32.gmra.mrb[0].mxu0 %v1689
        %v1757 = vpop.f32.mrb[0].mxu0
        %v1758 = vadd.f32 %v1687, %v1757
        %v1759 = vpop.f32.mrb[0].mxu0
        %v1760 = vadd.f32 %v1687, %v1759
        %1761 = vdwg.mxu0
        %1762 = vmatprep.subr.mxu0 %v1648
        %1763 = vmatpush1.msra.mxu0 %v1647
        %1764 = vmatprep.subr.mxu0 %v1656
        %1765 = vmatpush1.msra.mxu0 %v1655
        %1766 = vmatprep.subr.mxu0 %v1664
        %1767 = vmatpush1.msra.mxu0 %v1663
        %1768 = vmatprep.subr.mxu0 %v1672
        %1769 = vmatpush1.msra.mxu0 %v1671
        %1770 = vmatprep.subr.mxu0 0.0
        %1771 = vmatpush1.msra.mxu0 0.0
        %1772 = vmatprep.subr.mxu0 0.0
        %1773 = vmatpush1.msra.mxu0 0.0
        %1774 = vmatprep.subr.mxu0 0.0
        %1775 = vmatpush1.msra.mxu0 0.0
        %1776 = vmatprep.subr.mxu0 0.0
        %1777 = vmatpush1.msra.mxu0 0.0
        %1778 = vmatprep.subr.mxu0 0.0
        %1779 = vmatpush1.msra.mxu0 0.0
        %1780 = vmatprep.subr.mxu0 0.0
        %1781 = vmatpush1.msra.mxu0 0.0
        %1782 = vmatprep.subr.mxu0 0.0
        %1783 = vmatpush1.msra.mxu0 0.0
        %1784 = vmatprep.subr.mxu0 0.0
        %1785 = vmatpush1.msra.mxu0 0.0
        %1786 = vmatprep.subr.mxu0 0.0
        %1787 = vmatpush1.msra.mxu0 0.0
        %1788 = vmatprep.subr.mxu0 0.0
        %1789 = vmatpush1.msra.mxu0 0.0
        %1790 = vmatprep.subr.mxu0 0.0
        %1791 = vmatpush1.msra.mxu0 0.0
        %1792 = vmatprep.subr.mxu0 0.0
        %1793 = vmatpush1.msra.mxu0 0.0
        %1794 = vmatprep.subr.mxu0 0.0
        %1795 = vmatpush1.msra.mxu0 0.0
        %1796 = vmatprep.subr.mxu0 0.0
        %1797 = vmatpush1.msra.mxu0 0.0
        %1798 = vmatprep.subr.mxu0 0.0
        %1799 = vmatpush1.msra.mxu0 0.0
        %1800 = vmatprep.subr.mxu0 0.0
        %1801 = vmatpush1.msra.mxu0 0.0
        %1802 = vmatprep.subr.mxu0 0.0
        %1803 = vmatpush1.msra.mxu0 0.0
        %1804 = vmatprep.subr.mxu0 0.0
        %1805 = vmatpush1.msra.mxu0 0.0
        %1806 = vmatprep.subr.mxu0 0.0
        %1807 = vmatpush1.msra.mxu0 0.0
        %1808 = vmatprep.subr.mxu0 0.0
        %1809 = vmatpush1.msra.mxu0 0.0
        %1810 = vmatprep.subr.mxu0 0.0
        %1811 = vmatpush1.msra.mxu0 0.0
        %1812 = vmatprep.subr.mxu0 0.0
        %1813 = vmatpush1.msra.mxu0 0.0
        %1814 = vmatprep.subr.mxu0 0.0
        %1815 = vmatpush1.msra.mxu0 0.0
        %1816 = vmatprep.subr.mxu0 0.0
        %1817 = vmatpush1.msra.mxu0 0.0
        %1818 = vmatprep.subr.mxu0 0.0
        %1819 = vmatpush1.msra.mxu0 0.0
        %1820 = vmatprep.subr.mxu0 0.0
        %1821 = vmatpush1.msra.mxu0 0.0
        %1822 = vmatprep.subr.mxu0 0.0
        %1823 = vmatpush1.msra.mxu0 0.0
        %1824 = vmatprep.subr.mxu0 0.0
        %1825 = vmatpush1.msra.mxu0 0.0
        %1826 = vmatprep.mubr.f32.mxu0 0.0
        %1827 = vmatmul.mubr.f32.gmra.mrb[0].mxu0 %v1689
        %v1828 = vpop.f32.mrb[0].mxu0
        %v1829 = vadd.f32 %v1687, %v1828
        %v1830 = vpop.f32.mrb[0].mxu0
        %v1831 = vadd.f32 %v1687, %v1830
        %1832 = vdwg.mxu0
        %1833 = vmatprep.subr.mxu0 %v1650
        %1834 = vmatpush1.msra.mxu0 %v1649
        %1835 = vmatprep.subr.mxu0 %v1658
        %1836 = vmatpush1.msra.mxu0 %v1657
        %1837 = vmatprep.subr.mxu0 %v1666
        %1838 = vmatpush1.msra.mxu0 %v1665
        %1839 = vmatprep.subr.mxu0 %v1674
        %1840 = vmatpush1.msra.mxu0 %v1673
        %1841 = vmatprep.subr.mxu0 0.0
        %1842 = vmatpush1.msra.mxu0 0.0
        %1843 = vmatprep.subr.mxu0 0.0
        %1844 = vmatpush1.msra.mxu0 0.0
        %1845 = vmatprep.subr.mxu0 0.0
        %1846 = vmatpush1.msra.mxu0 0.0
        %1847 = vmatprep.subr.mxu0 0.0
        %1848 = vmatpush1.msra.mxu0 0.0
        %1849 = vmatprep.subr.mxu0 0.0
        %1850 = vmatpush1.msra.mxu0 0.0
        %1851 = vmatprep.subr.mxu0 0.0
        %1852 = vmatpush1.msra.mxu0 0.0
        %1853 = vmatprep.subr.mxu0 0.0
        %1854 = vmatpush1.msra.mxu0 0.0
        %1855 = vmatprep.subr.mxu0 0.0
        %1856 = vmatpush1.msra.mxu0 0.0
        %1857 = vmatprep.subr.mxu0 0.0
        %1858 = vmatpush1.msra.mxu0 0.0
        %1859 = vmatprep.subr.mxu0 0.0
        %1860 = vmatpush1.msra.mxu0 0.0
        %1861 = vmatprep.subr.mxu0 0.0
        %1862 = vmatpush1.msra.mxu0 0.0
        %1863 = vmatprep.subr.mxu0 0.0
        %1864 = vmatpush1.msra.mxu0 0.0
        %1865 = vmatprep.subr.mxu0 0.0
        %1866 = vmatpush1.msra.mxu0 0.0
        %1867 = vmatprep.subr.mxu0 0.0
        %1868 = vmatpush1.msra.mxu0 0.0
        %1869 = vmatprep.subr.mxu0 0.0
        %1870 = vmatpush1.msra.mxu0 0.0
        %1871 = vmatprep.subr.mxu0 0.0
        %1872 = vmatpush1.msra.mxu0 0.0
        %1873 = vmatprep.subr.mxu0 0.0
        %1874 = vmatpush1.msra.mxu0 0.0
        %1875 = vmatprep.subr.mxu0 0.0
        %1876 = vmatpush1.msra.mxu0 0.0
        %1877 = vmatprep.subr.mxu0 0.0
        %1878 = vmatpush1.msra.mxu0 0.0
        %1879 = vmatprep.subr.mxu0 0.0
        %1880 = vmatpush1.msra.mxu0 0.0
        %1881 = vmatprep.subr.mxu0 0.0
        %1882 = vmatpush1.msra.mxu0 0.0
        %1883 = vmatprep.subr.mxu0 0.0
        %1884 = vmatpush1.msra.mxu0 0.0
        %1885 = vmatprep.subr.mxu0 0.0
        %1886 = vmatpush1.msra.mxu0 0.0
        %1887 = vmatprep.subr.mxu0 0.0
        %1888 = vmatpush1.msra.mxu0 0.0
        %1889 = vmatprep.subr.mxu0 0.0
        %1890 = vmatpush1.msra.mxu0 0.0
        %1891 = vmatprep.subr.mxu0 0.0
        %1892 = vmatpush1.msra.mxu0 0.0
        %1893 = vmatprep.subr.mxu0 0.0
        %1894 = vmatpush1.msra.mxu0 0.0
        %1895 = vmatprep.subr.mxu0 0.0
        %1896 = vmatpush1.msra.mxu0 0.0
        %1897 = vmatprep.mubr.f32.mxu0 0.0
        %1898 = vmatmul.mubr.f32.gmra.mrb[0].mxu0 %v1689
        %v1899 = vpop.f32.mrb[0].mxu0
        %v1900 = vadd.f32 %v1687, %v1899
        %v1901 = vpop.f32.mrb[0].mxu0
        %v1902 = vadd.f32 %v1687, %v1901
        %1903 = vdwg.mxu0
        %1904 = vmatprep.subr.mxu0 %v1652
        %1905 = vmatpush1.msra.mxu0 %v1651
        %1906 = vmatprep.subr.mxu0 %v1660
        %1907 = vmatpush1.msra.mxu0 %v1659
        %1908 = vmatprep.subr.mxu0 %v1668
        %1909 = vmatpush1.msra.mxu0 %v1667
        %1910 = vmatprep.subr.mxu0 %v1676
        %1911 = vmatpush1.msra.mxu0 %v1675
        %1912 = vmatprep.subr.mxu0 0.0
        %1913 = vmatpush1.msra.mxu0 0.0
        %1914 = vmatprep.subr.mxu0 0.0
        %1915 = vmatpush1.msra.mxu0 0.0
        %1916 = vmatprep.subr.mxu0 0.0
        %1917 = vmatpush1.msra.mxu0 0.0
        %1918 = vmatprep.subr.mxu0 0.0
        %1919 = vmatpush1.msra.mxu0 0.0
        %1920 = vmatprep.subr.mxu0 0.0
        %1921 = vmatpush1.msra.mxu0 0.0
        %1922 = vmatprep.subr.mxu0 0.0
        %1923 = vmatpush1.msra.mxu0 0.0
        %1924 = vmatprep.subr.mxu0 0.0
        %1925 = vmatpush1.msra.mxu0 0.0
        %1926 = vmatprep.subr.mxu0 0.0
        %1927 = vmatpush1.msra.mxu0 0.0
        %1928 = vmatprep.subr.mxu0 0.0
        %1929 = vmatpush1.msra.mxu0 0.0
        %1930 = vmatprep.subr.mxu0 0.0
        %1931 = vmatpush1.msra.mxu0 0.0
        %1932 = vmatprep.subr.mxu0 0.0
        %1933 = vmatpush1.msra.mxu0 0.0
        %1934 = vmatprep.subr.mxu0 0.0
        %1935 = vmatpush1.msra.mxu0 0.0
        %1936 = vmatprep.subr.mxu0 0.0
        %1937 = vmatpush1.msra.mxu0 0.0
        %1938 = vmatprep.subr.mxu0 0.0
        %1939 = vmatpush1.msra.mxu0 0.0
        %1940 = vmatprep.subr.mxu0 0.0
        %1941 = vmatpush1.msra.mxu0 0.0
        %1942 = vmatprep.subr.mxu0 0.0
        %1943 = vmatpush1.msra.mxu0 0.0
        %1944 = vmatprep.subr.mxu0 0.0
        %1945 = vmatpush1.msra.mxu0 0.0
        %1946 = vmatprep.subr.mxu0 0.0
        %1947 = vmatpush1.msra.mxu0 0.0
        %1948 = vmatprep.subr.mxu0 0.0
        %1949 = vmatpush1.msra.mxu0 0.0
        %1950 = vmatprep.subr.mxu0 0.0
        %1951 = vmatpush1.msra.mxu0 0.0
        %1952 = vmatprep.subr.mxu0 0.0
        %1953 = vmatpush1.msra.mxu0 0.0
        %1954 = vmatprep.subr.mxu0 0.0
        %1955 = vmatpush1.msra.mxu0 0.0
        %1956 = vmatprep.subr.mxu0 0.0
        %1957 = vmatpush1.msra.mxu0 0.0
        %1958 = vmatprep.subr.mxu0 0.0
        %1959 = vmatpush1.msra.mxu0 0.0
        %1960 = vmatprep.subr.mxu0 0.0
        %1961 = vmatpush1.msra.mxu0 0.0
        %1962 = vmatprep.subr.mxu0 0.0
        %1963 = vmatpush1.msra.mxu0 0.0
        %1964 = vmatprep.subr.mxu0 0.0
        %1965 = vmatpush1.msra.mxu0 0.0
        %1966 = vmatprep.subr.mxu0 0.0
        %1967 = vmatpush1.msra.mxu0 0.0
        %1968 = vmatprep.mubr.f32.mxu0 0.0
        %1969 = vmatmul.mubr.f32.gmra.mrb[0].mxu0 %v1689
        %v1970 = vpop.f32.mrb[0].mxu0
        %v1971 = vadd.f32 %v1687, %v1970
        %v1972 = vpop.f32.mrb[0].mxu0
        %v1973 = vadd.f32 %v1687, %v1972
        %1974 = vdwg.mxu0
        %v1983 = vcombine.low %v1758, %v1760
        %v1984 = vcombine.low %v1829, %v1831
        %v1985 = vcombine.low %v1900, %v1902
        %v1986 = vcombine.low %v1971, %v1973
        %v1988 = vunpack.c.l.s4 1966171168
        %v1989 = vunpack.c.0.s8 %v1988
        %v1990 = vlaneseq
        %v1991 = vshrl.u32 %v1990, 7
        %v1992 = vsub.s32 %v1989, %v1991
        %v1993 = vrot.slane %v1983, %v1992
        %v1995 = vunpack.c.l.s4 1966171168
        %v1996 = vunpack.c.0.s8 %v1995
        %v1997 = vlaneseq
        %v1998 = vshrl.u32 %v1997, 7
        %v1999 = vsub.s32 %v1996, %v1998
        %v2000 = vrot.slane %v1984, %v1999
        %v2002 = vunpack.c.l.s4 1966171168
        %v2003 = vunpack.c.0.s8 %v2002
        %v2004 = vlaneseq
        %v2005 = vshrl.u32 %v2004, 7
        %v2006 = vsub.s32 %v2003, %v2005
        %v2007 = vrot.slane %v1985, %v2006
        %v2009 = vunpack.c.l.s4 1966171168
        %v2010 = vunpack.c.0.s8 %v2009
        %v2011 = vlaneseq
        %v2012 = vshrl.u32 %v2011, 7
        %v2013 = vsub.s32 %v2010, %v2012
        %v2014 = vrot.slane %v1986, %v2013
        %v2015 = vcombine.low %v1993, %v2000
        %v2016 = vcombine.low %v2007, %v2014
        %v2018 = vunpack.c.l.s4 1966171168
        %v2019 = vunpack.c.0.s8 %v2018
        %v2020 = vlaneseq
        %v2021 = vshrl.u32 %v2020, 7
        %v2022 = vsub.s32 %v2019, %v2021
        %v2023 = vrot.slane %v2015, %v2022
        %v2025 = vunpack.c.l.s4 1966171168
        %v2026 = vunpack.c.0.s8 %v2025
        %v2027 = vlaneseq
        %v2028 = vshrl.u32 %v2027, 7
        %v2029 = vsub.s32 %v2026, %v2028
        %v2030 = vrot.slane %v2016, %v2029
        %v2031 = vcombine.low %v2023, %v2030
        %2033 = vst [vmem:[%s328] sm:$0xff] %v2031
        %s2034 = sand.u32 %s227, 1
        %s2035 = scalar_lea.sflag [#allocation4], %s2034
        %s2036 = sand.u32 %s227, 1
        %s2037 = smul.addr %s2036, 8
        %s2038 = scalar_lea.vmem [#allocation3], %s2037
        // Predicated region
        $region57: #{tpu_custom_call.1} parent=55 // pred_check
          %p2039 = pneg %p237
        $region58: #{tpu_custom_call.1} parent=55 // pred_check_branch
          %2041 = sbr.rel (%p2039) target = $region60
        $region59: #{tpu_custom_call.1} parent=55 // pred_region
          %s2042 = smul.u32 8, %s25
          %s2044 = ssub.s32 128, 128
          %2045 = vsyncadd %s2035, %s2044
          %s2046 = smul.addr %s2042, 16
          %s2047 = scalar_lea.hbm %s9, %s2046
          %s2049 = sshll.u32 %s2038, 4
          %s2050 = int_to_ptr.vmem [resolvable:$true] %s2049
          %2052 = dma.vmem_to_hbm [thread:$0]  %s2050, 128, %s2047, %s2035
        $region60: #{tpu_custom_call.1} parent=55 // pred_fallthru
          _
      $region56: #{tpu_custom_call.1} parent=5 // pred_fallthru
        _
      %p2053 = scmp.le.s32.totalorder 2, %s20
      // Predicated region
      $region61: #{tpu_custom_call.1} parent=5 // pred_check
        %p2054 = pneg %p2053
      $region62: #{tpu_custom_call.1} parent=5 // pred_check_branch
        %2056 = sbr.rel (%p2054) target = $region64
      $region63: #{tpu_custom_call.1} parent=5 // pred_region
        %s2057 = ssub.s32 %s20, 2
        // Predicated region
        $region65: #{tpu_custom_call.1} parent=63 // pred_check
          %p2058 = pneg %p243
        $region66: #{tpu_custom_call.1} parent=63 // pred_check_branch
          %2060 = sbr.rel (%p2058) target = $region68
        $region67: #{tpu_custom_call.1} parent=63 // pred_region
          %s2061 = sand.u32 %s228, 1
          %s2062 = scalar_lea.sflag [#allocation4], %s2061
          %s2063 = sand.u32 %s228, 1
          %s2064 = smul.addr %s2063, 8
          %s2065 = scalar_lea.vmem [#allocation3], %s2064
          %2066 = dma.done %s2062, 128
        $region68: #{tpu_custom_call.1} parent=63 // pred_fallthru
          _
      $region64: #{tpu_custom_call.1} parent=5 // pred_fallthru
        _
    $region6: #{tpu_custom_call.1} parent=1 // loop_footer
      %s24 = sadd.s32 1, %s20
    $region7: #{tpu_custom_call.1} parent=1 // loop_footer_branch
      %19 = sbr.rel target = $region3
    $region8: #{tpu_custom_call.1} parent=1 // loop_exit
      _
    %2067 = vsyncpa [#allocation4], 1
    %s2068 = scalar_lea.sflag [#allocation4], 1
    %2069 = vsyncpa %s2068, 1

</llo_original>
